<compile_context>
chip_gen: v7x
topology: tpu7x:2x2x1
jax: 0.10.0
libtpu: 0.0.40
codegen_flags: <defaults>
</compile_context>

<pallas_src>
import functools

import jax
import jax.numpy as jnp
from jax.experimental import pallas as pl
from jax.experimental.pallas import tpu as pltpu


_VMEM = pl.BlockSpec(memory_space=pltpu.MemorySpace.VMEM)
CP = 128  # padded lane width for channels / MLP hidden / edge-attr lanes


# ---------------------------------------------------------------------------
# Fused kernel (single grid point)
# ---------------------------------------------------------------------------
def _fused_gnn_kernel(
    # graph
    x_ref, src_col_ref, dst_col_ref, dst_row_ref, eattr_gat_ref,
    src_mlp_ref, dst_mlp_ref, eattr_mlp_ref,
    # conv1: W augmented with W@att_src column, att_dst row, att_edge row, bias
    w1_ref, attd1_ref, atte1_ref, bias1_ref,
    # conv2
    w2_ref, attd2_ref, atte2_ref, bias2_ref,
    # edge MLP: [W1_src | W1_dst] node-level projection, W1_edge, b1, W2 row, b2
    w1sd_ref, w1e_ref, mb1_ref, w2row_ref, mb2_ref,
    # output: [1, Emlp] lane-dense (wrapper slices to [E, 1])
    out_ref,
    *, e, c1, c2, ed, negative_slope):
    f32 = jnp.float32
    bf16 = jnp.bfloat16
    n = x_ref.shape[0]
    ep = src_col_ref.shape[0]        # E + N (self loops appended by wrapper)
    emlp = src_mlp_ref.shape[0]      # round_up(E, 128)

    lane128 = jax.lax.broadcasted_iota(jnp.int32, (1, CP), 1)

    # ---- one-hot gather/scatter operators (0/1 exact in bf16) ----------------
    lane_n = jax.lax.broadcasted_iota(jnp.int32, (ep, n), 1)
    src_oh = (src_col_ref[...] == lane_n).astype(bf16)              # [Ep, N]
    dst_mask = dst_col_ref[...] == lane_n                           # [Ep, N] bool
    sub_n = jax.lax.broadcasted_iota(jnp.int32, (n, ep), 0)
    dst_ohT = (dst_row_ref[...] == sub_n).astype(bf16)              # [N, Ep]

    # ---- add_self_loops(fill_value='mean'): per-node mean of incoming attrs --
    # eattr_gat: rows 0..E-1 real attrs (+ a 1.0 marker in lane `ed`), rows >= E zero.
    eattr_gat = eattr_gat_ref[...]                                  # [Ep, 128] f32
    sums_plus = jnp.dot(dst_ohT, eattr_gat.astype(bf16),
                        preferred_element_type=f32)                 # [N, 128]
    cnt = jnp.maximum(sums_plus[:, ed:ed + 1], 1.0)                 # exact in-degree
    inv_cnt = 1.0 / cnt                                             # exact divide

    neg_inf = jnp.float32(-1e30)

    def a_edge_for(atte_row):
        # att_edge term per (augmented) edge; self-loop rows get the mean attrs.
        a_real = jnp.sum(eattr_gat * atte_row, axis=1, keepdims=True)       # [Ep,1]
        a_loop = jnp.sum(sums_plus * atte_row, axis=1, keepdims=True) * inv_cnt
        return a_real + jnp.concatenate(
            [jnp.zeros((e, 1), f32), a_loop], axis=0)               # [Ep, 1]

    def gat_layer(x_in, w_ref, attd_ref, atte_ref, bias_ref, c):
        x_bf = x_in.astype(bf16)
        # lin(x); column c carries a_src = h @ att_src (folded into the weight)
        h = jnp.dot(x_bf, w_ref[...], preferred_element_type=f32)   # [N, 128]
        h_bf = h.astype(bf16)
        # node-level a_dst as a [1, N] row (contract the lane axis)
        a_dst_row = jax.lax.dot_general(
            attd_ref[...], h_bf, (((1,), (1,)), ((), ())),
            preferred_element_type=f32)                             # [1, N]
        # per-edge gathers: h[src] and a_src[src] in one matmul
        g_src = jnp.dot(src_oh, h_bf, preferred_element_type=f32)   # [Ep, 128]
        a_src_e = g_src[:, c:c + 1]                                 # [Ep, 1]
        a_dst_e = jnp.sum(jnp.where(dst_mask, a_dst_row, 0.0),
                          axis=1, keepdims=True)                    # [Ep, 1]
        alpha = a_src_e + a_dst_e + a_edge_for(atte_ref[...])
        alpha = jnp.where(alpha > 0, alpha, negative_slope * alpha)  # leaky_relu
        # segment-softmax max (numerical stability)
        node_max = jnp.max(jnp.where(dst_mask, alpha, neg_inf),
                           axis=0, keepdims=True)                   # [1, N]
        edge_max = jnp.max(jnp.where(dst_mask, node_max, neg_inf),
                           axis=1, keepdims=True)                   # [Ep, 1]
        exp_a = jnp.exp(alpha - edge_max)                           # [Ep, 1]
        # messages scaled by exp; exp itself rides padded lane c of the scatter
        msg = jnp.where(lane128 == c, exp_a, g_src * exp_a)         # [Ep, 128]
        scat = jnp.dot(dst_ohT, msg.astype(bf16),
                       preferred_element_type=f32)                  # [N, 128]
        denom = scat[:, c:c + 1]                                    # sum exp per node
        out = scat * pl.reciprocal(denom, approx=True)
        out = jnp.where(lane128 < c, out + bias_ref[...], 0.0)      # zero padded lanes
        return jnp.maximum(out, 0.0)                                # ReLU

    h1 = gat_layer(x_ref[...], w1_ref, attd1_ref, atte1_ref, bias1_ref, c1)
    h2 = gat_layer(h1, w2_ref, attd2_ref, atte2_ref, bias2_ref, c2)

    # ---- edge MLP: project at node level, then gather per (padded) edge ------
    pre = jnp.dot(h2.astype(bf16), w1sd_ref[...],
                  preferred_element_type=f32)                       # [N, 256]
    pre_bf = pre.astype(bf16)
    lane_n_m = jax.lax.broadcasted_iota(jnp.int32, (emlp, n), 1)
    src_oh_m = (src_mlp_ref[...] == lane_n_m).astype(bf16)          # [Emlp, N]
    dst_oh_m = (dst_mlp_ref[...] == lane_n_m).astype(bf16)          # [Emlp, N]

    hid = (jnp.dot(src_oh_m, pre_bf[:, :CP], preferred_element_type=f32)
           + jnp.dot(dst_oh_m, pre_bf[:, CP:], preferred_element_type=f32)
           + jnp.dot(eattr_mlp_ref[...].astype(bf16), w1e_ref[...],
                     preferred_element_type=f32)
           + mb1_ref[...])                                          # [Emlp, 128]
    hid = jnp.maximum(hid, 0.0)
    # lane-dense [1, Emlp] output row (contract the hidden lane axis)
    out_row = jax.lax.dot_general(w2row_ref[...], hid.astype(bf16),
                                  (((1,), (1,)), ((), ())),
                                  preferred_element_type=f32)       # [1, Emlp]
    out_ref[...] = out_row + mb2_ref[...]


# ---------------------------------------------------------------------------
# Wrapper
# ---------------------------------------------------------------------------
def edge_prediction_gnn(params, x, edge_index, edge_attr):
    # NOTE: edge_index is assumed self-loop free (true for the data built below),
    # so GATConv's internal remove_self_loops is a no-op.
    f32, bf16 = jnp.float32, jnp.bfloat16
    n = x.shape[0]
    e = edge_index.shape[1]
    ep = e + n
    emlp = ((e + CP - 1) // CP) * CP
    ed = edge_attr.shape[1]

    c1_out = params["conv1"]["w"].shape[1]
    c2_out = params["conv2"]["w"].shape[1]
    assert c1_out < CP and c2_out < CP and ed < CP

    src = edge_index[0].astype(jnp.int32)
    dst = edge_index[1].astype(jnp.int32)
    loops = jnp.arange(n, dtype=jnp.int32)
    src_aug = jnp.concatenate([src, loops]).reshape(ep, 1)
    dst_flat = jnp.concatenate([dst, loops])
    dst_aug = dst_flat.reshape(ep, 1)
    dst_row = dst_flat.reshape(1, ep)

    # MLP edge indices padded to a lane-dense multiple of 128 (pad index = -1
    # -> all-zero one-hot rows; the padded output lanes are sliced off below).
    pad_idx = jnp.full((emlp - e,), -1, jnp.int32)
    src_mlp = jnp.concatenate([src, pad_idx]).reshape(emlp, 1)
    dst_mlp = jnp.concatenate([dst, pad_idx]).reshape(emlp, 1)

    # edge attrs, lane-padded to 128; lane `ed` carries a 1.0 count marker.
    eattr_gat = jnp.zeros((ep, CP), f32)
    eattr_gat = eattr_gat.at[:e, :ed].set(edge_attr)
    eattr_gat = eattr_gat.at[:e, ed].set(1.0)
    eattr_mlp = jnp.zeros((emlp, CP), f32).at[:e, :ed].set(edge_attr)

    def conv_inputs(p, cin_rows, c_out):
        w = p["w"]
        cin = w.shape[0]
        w_aug = jnp.zeros((cin_rows, CP), f32)
        w_aug = w_aug.at[:cin, :c_out].set(w)
        w_aug = w_aug.at[:cin, c_out].set((w @ p["att_src"])[:, 0])   # fold a_src
        attd = jnp.zeros((1, CP), f32).at[0, :c_out].set(p["att_dst"][:, 0])
        atte = jnp.zeros((1, CP), f32).at[0, :ed].set((p["w_edge"] @ p["att_edge"])[:, 0])
        bias = jnp.zeros((1, CP), f32).at[:, :c_out].set(p["bias"])
        return (w_aug.astype(bf16), attd.astype(bf16), atte, bias)

    conv1_in = conv_inputs(params["conv1"], x.shape[1], c1_out)
    conv2_in = conv_inputs(params["conv2"], CP, c2_out)

    # edge MLP weights; cat order in the module is [src | edge_attr | dst]
    mlp = params["mlp"]
    hc = mlp["w2"].shape[0]
    w1 = mlp["w1"]
    w1s, w1e, w1d = w1[:hc], w1[hc:hc + ed], w1[hc + ed:]
    w1sd = jnp.zeros((CP, 2 * CP), f32)
    w1sd = w1sd.at[:hc, :hc].set(w1s)
    w1sd = w1sd.at[:hc, CP:CP + hc].set(w1d)
    w1e_pad = jnp.zeros((CP, CP), f32).at[:ed, :hc].set(w1e)
    mb1 = jnp.zeros((1, CP), f32).at[:, :hc].set(mlp["b1"])
    w2row = jnp.zeros((1, CP), f32).at[:, :hc].set(mlp["w2"].T)
    mb2 = mlp["b2"]

    args = (x, src_aug, dst_aug, dst_row, eattr_gat, src_mlp, dst_mlp, eattr_mlp,
            *conv1_in, *conv2_in,
            w1sd.astype(bf16), w1e_pad.astype(bf16), mb1, w2row.astype(bf16), mb2)

    flops = int(
        2 * n * x.shape[1] * CP            # conv1 lin (+att_src column)
        + 2 * n * CP * CP                  # conv2 lin (+att_src column)
        + 2 * (2 * ep * n * CP) * 2        # per-layer src gather + dst scatter
        + 2 * n * ep * CP                  # self-loop mean scatter
        + 2 * n * CP * (2 * CP)            # MLP node-level projection
        + 2 * (2 * emlp * n * CP)          # MLP src/dst gathers
        + 2 * emlp * CP * CP               # MLP edge-attr projection
        + 2 * emlp * CP)                   # output row contraction
    transcendentals = int(2 * ep)
    bytes_accessed = int(sum(a.size * a.dtype.itemsize for a in args) + 4 * emlp)

    kernel = functools.partial(_fused_gnn_kernel, e=e, c1=c1_out, c2=c2_out,
                               ed=ed, negative_slope=0.2)
    out_row = pl.pallas_call(
        kernel,
        out_shape=jax.ShapeDtypeStruct((1, emlp), jnp.float32),
        in_specs=[_VMEM] * len(args),
        out_specs=_VMEM,
        compiler_params=pltpu.CompilerParams(vmem_limit_bytes=64 * 1024 * 1024),
        cost_estimate=pl.CostEstimate(flops=flops,
                                      transcendentals=transcendentals,
                                      bytes_accessed=bytes_accessed),
    )(*args)
    return out_row[:, :e].reshape(e, 1)


# ---------------------------------------------------------------------------
# Deterministic parameter init (shapes match the PyTorch module; values synthetic)
# ---------------------------------------------------------------------------
def init_params(key, in_channels, emb_channels, hidden_channels, edge_dim=1):
    ks = iter(jax.random.split(key, 20))
    f32 = jnp.float32

    def rnd(shape, scale=0.2):
        return scale * jax.random.normal(next(ks), shape, f32)

    def gat_params(fin, fout):
        return dict(
            w=rnd((fin, fout)),            # lin.weight.T
            att_src=rnd((fout, 1)),        # heads=1
            att_dst=rnd((fout, 1)),
            w_edge=rnd((edge_dim, fout)),  # lin_edge.weight.T
            att_edge=rnd((fout, 1)),
            bias=jnp.zeros((1, fout), f32),
        )

    mlp = dict(
        w1=rnd((2 * hidden_channels + edge_dim, hidden_channels)),
        b1=rnd((1, hidden_channels), 0.05),
        w2=rnd((hidden_channels, 1)),
        b2=rnd((1, 1), 0.05),
    )
    return dict(conv1=gat_params(in_channels, emb_channels),
                conv2=gat_params(emb_channels, hidden_channels),
                mlp=mlp)


if __name__ == "__main__":
    N, E = 16, 32
    IN_CH, EMB_CH, HID_CH, EDGE_DIM = 8, 16, 32, 1

    key = jax.random.PRNGKey(0)
    k_x, k_e, k_s, k_o, k_p = jax.random.split(key, 5)

    x = jax.random.normal(k_x, (N, IN_CH), jnp.float32)
    edge_attr = jax.random.normal(k_e, (E, EDGE_DIM), jnp.float32)
    # edges with src != dst (no self loops by construction)
    src = jax.random.randint(k_s, (E,), 0, N, jnp.int32)
    off = jax.random.randint(k_o, (E,), 1, N, jnp.int32)
    dst = (src + off) % N
    edge_index = jnp.stack([src, dst], axis=0)

    params = init_params(k_p, IN_CH, EMB_CH, HID_CH, EDGE_DIM)

    fwd = jax.jit(edge_prediction_gnn)
    out = jax.block_until_ready(fwd(params, x, edge_index, edge_attr))
    assert out.shape == (E, 1) and bool(jnp.all(jnp.isfinite(out)))
    print("KERNEL_OK")
</pallas_src>

<mosaic_0001>
module attributes {stable_mosaic.version = 11 : i64} {
  func.func @_fused_gnn_kernel(%arg0: memref<16x8xf32, #tpu.memory_space<vmem>>, %arg1: memref<48x1xi32, #tpu.memory_space<vmem>>, %arg2: memref<48x1xi32, #tpu.memory_space<vmem>>, %arg3: memref<1x48xi32, #tpu.memory_space<vmem>>, %arg4: memref<48x128xf32, #tpu.memory_space<vmem>>, %arg5: memref<128x1xi32, #tpu.memory_space<vmem>>, %arg6: memref<128x1xi32, #tpu.memory_space<vmem>>, %arg7: memref<128x128xf32, #tpu.memory_space<vmem>>, %arg8: memref<8x128xbf16, #tpu.memory_space<vmem>>, %arg9: memref<1x128xbf16, #tpu.memory_space<vmem>>, %arg10: memref<1x128xf32, #tpu.memory_space<vmem>>, %arg11: memref<1x128xf32, #tpu.memory_space<vmem>>, %arg12: memref<128x128xbf16, #tpu.memory_space<vmem>>, %arg13: memref<1x128xbf16, #tpu.memory_space<vmem>>, %arg14: memref<1x128xf32, #tpu.memory_space<vmem>>, %arg15: memref<1x128xf32, #tpu.memory_space<vmem>>, %arg16: memref<128x256xbf16, #tpu.memory_space<vmem>>, %arg17: memref<128x128xbf16, #tpu.memory_space<vmem>>, %arg18: memref<1x128xf32, #tpu.memory_space<vmem>>, %arg19: memref<1x128xbf16, #tpu.memory_space<vmem>>, %arg20: memref<1x1xf32, #tpu.memory_space<vmem>>, %arg21: memref<1x128xf32, #tpu.memory_space<vmem>>) attributes {dimension_semantics = [], scalar_prefetch = 0 : i64, scratch_operands = 0 : i64, tpu.core_type = #tpu.core_type<tc>} {
    %0 = tpu.iota {dimensions = array<i32: 1>} : vector<1x128xi32>
    %1 = tpu.iota {dimensions = array<i32: 1>} : vector<48x16xi32>
    %c0 = arith.constant 0 : index
    %c0_0 = arith.constant 0 : index
    %2 = vector.load %arg1[%c0, %c0_0] : memref<48x1xi32, #tpu.memory_space<vmem>>, vector<48x1xi32>
    %3 = vector.broadcast %2 : vector<48x1xi32> to vector<48x16xi32>
    %4 = arith.cmpi eq, %3, %1 : vector<48x16xi32>
    %5 = arith.extui %4 : vector<48x16xi1> to vector<48x16xi32>
    %6 = arith.sitofp %5 : vector<48x16xi32> to vector<48x16xf32>
    %7 = arith.truncf %6 : vector<48x16xf32> to vector<48x16xbf16>
    %c0_1 = arith.constant 0 : index
    %c0_2 = arith.constant 0 : index
    %8 = vector.load %arg2[%c0_1, %c0_2] : memref<48x1xi32, #tpu.memory_space<vmem>>, vector<48x1xi32>
    %9 = vector.broadcast %8 : vector<48x1xi32> to vector<48x16xi32>
    %10 = arith.cmpi eq, %9, %1 : vector<48x16xi32>
    %11 = tpu.iota {dimensions = array<i32: 0>} : vector<16x48xi32>
    %c0_3 = arith.constant 0 : index
    %c0_4 = arith.constant 0 : index
    %12 = vector.load %arg3[%c0_3, %c0_4] : memref<1x48xi32, #tpu.memory_space<vmem>>, vector<1x48xi32>
    %13 = vector.broadcast %12 : vector<1x48xi32> to vector<16x48xi32>
    %14 = arith.cmpi eq, %13, %11 : vector<16x48xi32>
    %15 = arith.extui %14 : vector<16x48xi1> to vector<16x48xi32>
    %16 = arith.sitofp %15 : vector<16x48xi32> to vector<16x48xf32>
    %17 = arith.truncf %16 : vector<16x48xf32> to vector<16x48xbf16>
    %c0_5 = arith.constant 0 : index
    %c0_6 = arith.constant 0 : index
    %18 = vector.load %arg4[%c0_5, %c0_6] : memref<48x128xf32, #tpu.memory_space<vmem>>, vector<48x128xf32>
    %19 = arith.truncf %18 : vector<48x128xf32> to vector<48x128xbf16>
    %cst = arith.constant dense<0.000000e+00> : vector<16x128xf32>
    %20 = tpu.matmul %17, %19, %cst {dimension_numbers = #tpu.dot_dimension_numbers<[1], [0], [0], [1], [0, 0, 1, 1], [], []>} : vector<16x48xbf16>, vector<48x128xbf16>, vector<16x128xf32> -> vector<16x128xf32>
    %21 = vector.extract_strided_slice %20 {offsets = [0, 1], sizes = [16, 1], strides = [1, 1]} : vector<16x128xf32> to vector<16x1xf32>
    %cst_7 = arith.constant 1.000000e+00 : f32
    %22 = vector.broadcast %cst_7 : f32 to vector<16x1xf32>
    %23 = arith.maximumf %21, %22 : vector<16x1xf32>
    %cst_8 = arith.constant 1.000000e+00 : f32
    %24 = vector.broadcast %cst_8 : f32 to vector<16x1xf32>
    %25 = arith.divf %24, %23 : vector<16x1xf32>
    %c0_9 = arith.constant 0 : index
    %c0_10 = arith.constant 0 : index
    %26 = vector.load %arg0[%c0_9, %c0_10] : memref<16x8xf32, #tpu.memory_space<vmem>>, vector<16x8xf32>
    %27 = arith.truncf %26 : vector<16x8xf32> to vector<16x8xbf16>
    %c0_11 = arith.constant 0 : index
    %c0_12 = arith.constant 0 : index
    %28 = vector.load %arg8[%c0_11, %c0_12] : memref<8x128xbf16, #tpu.memory_space<vmem>>, vector<8x128xbf16>
    %cst_13 = arith.constant dense<0.000000e+00> : vector<16x128xf32>
    %29 = tpu.matmul %27, %28, %cst_13 {dimension_numbers = #tpu.dot_dimension_numbers<[1], [0], [0], [1], [0, 0, 1, 1], [], []>} : vector<16x8xbf16>, vector<8x128xbf16>, vector<16x128xf32> -> vector<16x128xf32>
    %30 = arith.truncf %29 : vector<16x128xf32> to vector<16x128xbf16>
    %c0_14 = arith.constant 0 : index
    %c0_15 = arith.constant 0 : index
    %31 = vector.load %arg9[%c0_14, %c0_15] : memref<1x128xbf16, #tpu.memory_space<vmem>>, vector<1x128xbf16>
    %cst_16 = arith.constant dense<0.000000e+00> : vector<1x16xf32>
    %32 = tpu.matmul %31, %30, %cst_16 {dimension_numbers = #tpu.dot_dimension_numbers<[1], [1], [0], [0], [0, 0, 1, 0], [], []>} : vector<1x128xbf16>, vector<16x128xbf16>, vector<1x16xf32> -> vector<1x16xf32>
    %cst_17 = arith.constant dense<0.000000e+00> : vector<48x128xf32>
    %33 = tpu.matmul %7, %30, %cst_17 {dimension_numbers = #tpu.dot_dimension_numbers<[1], [0], [0], [1], [0, 0, 1, 1], [], []>} : vector<48x16xbf16>, vector<16x128xbf16>, vector<48x128xf32> -> vector<48x128xf32>
    %34 = vector.extract_strided_slice %33 {offsets = [0, 16], sizes = [48, 1], strides = [1, 1]} : vector<48x128xf32> to vector<48x1xf32>
    %cst_18 = arith.constant 0.000000e+00 : f32
    %35 = vector.shape_cast %32 : vector<1x16xf32> to vector<1x16xf32>
    %36 = vector.broadcast %35 : vector<1x16xf32> to vector<48x16xf32>
    %37 = vector.broadcast %cst_18 : f32 to vector<48x16xf32>
    %38 = arith.select %10, %36, %37 : vector<48x16xi1>, vector<48x16xf32>
    %cst_19 = arith.constant dense<0.000000e+00> : vector<48xf32>
    %39 = vector.multi_reduction <add>, %38, %cst_19 [1] : vector<48x16xf32> to vector<48xf32>
    %40 = vector.shape_cast %39 : vector<48xf32> to vector<48x1xf32>
    %41 = arith.addf %34, %40 : vector<48x1xf32>
    %c0_20 = arith.constant 0 : index
    %c0_21 = arith.constant 0 : index
    %42 = vector.load %arg10[%c0_20, %c0_21] : memref<1x128xf32, #tpu.memory_space<vmem>>, vector<1x128xf32>
    %43 = vector.broadcast %42 : vector<1x128xf32> to vector<48x128xf32>
    %44 = arith.mulf %18, %43 : vector<48x128xf32>
    %cst_22 = arith.constant dense<0.000000e+00> : vector<48xf32>
    %45 = vector.multi_reduction <add>, %44, %cst_22 [1] : vector<48x128xf32> to vector<48xf32>
    %46 = vector.shape_cast %45 : vector<48xf32> to vector<48x1xf32>
    %47 = vector.broadcast %42 : vector<1x128xf32> to vector<16x128xf32>
    %48 = arith.mulf %20, %47 : vector<16x128xf32>
    %cst_23 = arith.constant dense<0.000000e+00> : vector<16xf32>
    %49 = vector.multi_reduction <add>, %48, %cst_23 [1] : vector<16x128xf32> to vector<16xf32>
    %50 = vector.shape_cast %49 : vector<16xf32> to vector<16x1xf32>
    %51 = arith.mulf %50, %25 : vector<16x1xf32>
    %cst_24 = arith.constant 0.000000e+00 : f32
    %52 = vector.broadcast %cst_24 : f32 to vector<32x1xf32>
    %53 = tpu.concatenate %52, %51 in 0 : vector<32x1xf32>, vector<16x1xf32> -> vector<48x1xf32>
    %54 = arith.addf %46, %53 : vector<48x1xf32>
    %55 = arith.addf %41, %54 : vector<48x1xf32>
    %cst_25 = arith.constant 0.000000e+00 : f32
    %56 = vector.broadcast %cst_25 : f32 to vector<48x1xf32>
    %57 = arith.cmpf ogt, %55, %56 : vector<48x1xf32>
    %cst_26 = arith.constant 2.000000e-01 : f32
    %58 = vector.broadcast %cst_26 : f32 to vector<48x1xf32>
    %59 = arith.mulf %58, %55 : vector<48x1xf32>
    %60 = arith.select %57, %55, %59 : vector<48x1xi1>, vector<48x1xf32>
    %cst_27 = arith.constant -1.000000e+30 : f32
    %61 = vector.shape_cast %60 : vector<48x1xf32> to vector<48x1xf32>
    %62 = vector.broadcast %61 : vector<48x1xf32> to vector<48x16xf32>
    %63 = vector.broadcast %cst_27 : f32 to vector<48x16xf32>
    %64 = arith.select %10, %62, %63 : vector<48x16xi1>, vector<48x16xf32>
    %cst_28 = arith.constant dense<0xFF800000> : vector<16xf32>
    %65 = vector.multi_reduction <maximumf>, %64, %cst_28 [0] : vector<48x16xf32> to vector<16xf32>
    %66 = vector.shape_cast %65 : vector<16xf32> to vector<1x16xf32>
    %cst_29 = arith.constant -1.000000e+30 : f32
    %67 = vector.shape_cast %66 : vector<1x16xf32> to vector<1x16xf32>
    %68 = vector.broadcast %67 : vector<1x16xf32> to vector<48x16xf32>
    %69 = vector.broadcast %cst_29 : f32 to vector<48x16xf32>
    %70 = arith.select %10, %68, %69 : vector<48x16xi1>, vector<48x16xf32>
    %cst_30 = arith.constant dense<0xFF800000> : vector<48xf32>
    %71 = vector.multi_reduction <maximumf>, %70, %cst_30 [1] : vector<48x16xf32> to vector<48xf32>
    %72 = vector.shape_cast %71 : vector<48xf32> to vector<48x1xf32>
    %73 = arith.subf %60, %72 : vector<48x1xf32>
    %74 = math.exp %73 : vector<48x1xf32>
    %c16_i32 = arith.constant 16 : i32
    %75 = vector.broadcast %c16_i32 : i32 to vector<1x128xi32>
    %76 = arith.cmpi eq, %0, %75 : vector<1x128xi32>
    %77 = vector.broadcast %74 : vector<48x1xf32> to vector<48x128xf32>
    %78 = arith.mulf %33, %77 : vector<48x128xf32>
    %79 = vector.shape_cast %76 : vector<1x128xi1> to vector<1x128xi1>
    %80 = vector.broadcast %79 : vector<1x128xi1> to vector<48x128xi1>
    %81 = vector.shape_cast %74 : vector<48x1xf32> to vector<48x1xf32>
    %82 = vector.broadcast %81 : vector<48x1xf32> to vector<48x128xf32>
    %83 = arith.select %80, %82, %78 : vector<48x128xi1>, vector<48x128xf32>
    %84 = arith.truncf %83 : vector<48x128xf32> to vector<48x128xbf16>
    %cst_31 = arith.constant dense<0.000000e+00> : vector<16x128xf32>
    %85 = tpu.matmul %17, %84, %cst_31 {dimension_numbers = #tpu.dot_dimension_numbers<[1], [0], [0], [1], [0, 0, 1, 1], [], []>} : vector<16x48xbf16>, vector<48x128xbf16>, vector<16x128xf32> -> vector<16x128xf32>
    %86 = vector.extract_strided_slice %85 {offsets = [0, 16], sizes = [16, 1], strides = [1, 1]} : vector<16x128xf32> to vector<16x1xf32>
    %87 = tpu.reciprocal %86 {approx = true} : vector<16x1xf32> -> vector<16x1xf32>
    %88 = vector.broadcast %87 : vector<16x1xf32> to vector<16x128xf32>
    %89 = arith.mulf %85, %88 : vector<16x128xf32>
    %c16_i32_32 = arith.constant 16 : i32
    %90 = vector.broadcast %c16_i32_32 : i32 to vector<1x128xi32>
    %91 = arith.cmpi slt, %0, %90 : vector<1x128xi32>
    %c0_33 = arith.constant 0 : index
    %c0_34 = arith.constant 0 : index
    %92 = vector.load %arg11[%c0_33, %c0_34] : memref<1x128xf32, #tpu.memory_space<vmem>>, vector<1x128xf32>
    %93 = vector.broadcast %92 : vector<1x128xf32> to vector<16x128xf32>
    %94 = arith.addf %89, %93 : vector<16x128xf32>
    %cst_35 = arith.constant 0.000000e+00 : f32
    %95 = vector.shape_cast %91 : vector<1x128xi1> to vector<1x128xi1>
    %96 = vector.broadcast %95 : vector<1x128xi1> to vector<16x128xi1>
    %97 = vector.broadcast %cst_35 : f32 to vector<16x128xf32>
    %98 = arith.select %96, %94, %97 : vector<16x128xi1>, vector<16x128xf32>
    %cst_36 = arith.constant 0.000000e+00 : f32
    %99 = vector.broadcast %cst_36 : f32 to vector<16x128xf32>
    %100 = arith.maximumf %98, %99 : vector<16x128xf32>
    %101 = arith.truncf %100 : vector<16x128xf32> to vector<16x128xbf16>
    %c0_37 = arith.constant 0 : index
    %c0_38 = arith.constant 0 : index
    %102 = vector.load %arg12[%c0_37, %c0_38] : memref<128x128xbf16, #tpu.memory_space<vmem>>, vector<128x128xbf16>
    %cst_39 = arith.constant dense<0.000000e+00> : vector<16x128xf32>
    %103 = tpu.matmul %101, %102, %cst_39 {dimension_numbers = #tpu.dot_dimension_numbers<[1], [0], [0], [1], [0, 0, 1, 1], [], []>} : vector<16x128xbf16>, vector<128x128xbf16>, vector<16x128xf32> -> vector<16x128xf32>
    %104 = arith.truncf %103 : vector<16x128xf32> to vector<16x128xbf16>
    %c0_40 = arith.constant 0 : index
    %c0_41 = arith.constant 0 : index
    %105 = vector.load %arg13[%c0_40, %c0_41] : memref<1x128xbf16, #tpu.memory_space<vmem>>, vector<1x128xbf16>
    %cst_42 = arith.constant dense<0.000000e+00> : vector<1x16xf32>
    %106 = tpu.matmul %105, %104, %cst_42 {dimension_numbers = #tpu.dot_dimension_numbers<[1], [1], [0], [0], [0, 0, 1, 0], [], []>} : vector<1x128xbf16>, vector<16x128xbf16>, vector<1x16xf32> -> vector<1x16xf32>
    %cst_43 = arith.constant dense<0.000000e+00> : vector<48x128xf32>
    %107 = tpu.matmul %7, %104, %cst_43 {dimension_numbers = #tpu.dot_dimension_numbers<[1], [0], [0], [1], [0, 0, 1, 1], [], []>} : vector<48x16xbf16>, vector<16x128xbf16>, vector<48x128xf32> -> vector<48x128xf32>
    %108 = vector.extract_strided_slice %107 {offsets = [0, 32], sizes = [48, 1], strides = [1, 1]} : vector<48x128xf32> to vector<48x1xf32>
    %cst_44 = arith.constant 0.000000e+00 : f32
    %109 = vector.shape_cast %106 : vector<1x16xf32> to vector<1x16xf32>
    %110 = vector.broadcast %109 : vector<1x16xf32> to vector<48x16xf32>
    %111 = vector.broadcast %cst_44 : f32 to vector<48x16xf32>
    %112 = arith.select %10, %110, %111 : vector<48x16xi1>, vector<48x16xf32>
    %cst_45 = arith.constant dense<0.000000e+00> : vector<48xf32>
    %113 = vector.multi_reduction <add>, %112, %cst_45 [1] : vector<48x16xf32> to vector<48xf32>
    %114 = vector.shape_cast %113 : vector<48xf32> to vector<48x1xf32>
    %115 = arith.addf %108, %114 : vector<48x1xf32>
    %c0_46 = arith.constant 0 : index
    %c0_47 = arith.constant 0 : index
    %116 = vector.load %arg14[%c0_46, %c0_47] : memref<1x128xf32, #tpu.memory_space<vmem>>, vector<1x128xf32>
    %117 = vector.broadcast %116 : vector<1x128xf32> to vector<48x128xf32>
    %118 = arith.mulf %18, %117 : vector<48x128xf32>
    %cst_48 = arith.constant dense<0.000000e+00> : vector<48xf32>
    %119 = vector.multi_reduction <add>, %118, %cst_48 [1] : vector<48x128xf32> to vector<48xf32>
    %120 = vector.shape_cast %119 : vector<48xf32> to vector<48x1xf32>
    %121 = vector.broadcast %116 : vector<1x128xf32> to vector<16x128xf32>
    %122 = arith.mulf %20, %121 : vector<16x128xf32>
    %cst_49 = arith.constant dense<0.000000e+00> : vector<16xf32>
    %123 = vector.multi_reduction <add>, %122, %cst_49 [1] : vector<16x128xf32> to vector<16xf32>
    %124 = vector.shape_cast %123 : vector<16xf32> to vector<16x1xf32>
    %125 = arith.mulf %124, %25 : vector<16x1xf32>
    %cst_50 = arith.constant 0.000000e+00 : f32
    %126 = vector.broadcast %cst_50 : f32 to vector<32x1xf32>
    %127 = tpu.concatenate %126, %125 in 0 : vector<32x1xf32>, vector<16x1xf32> -> vector<48x1xf32>
    %128 = arith.addf %120, %127 : vector<48x1xf32>
    %129 = arith.addf %115, %128 : vector<48x1xf32>
    %cst_51 = arith.constant 0.000000e+00 : f32
    %130 = vector.broadcast %cst_51 : f32 to vector<48x1xf32>
    %131 = arith.cmpf ogt, %129, %130 : vector<48x1xf32>
    %cst_52 = arith.constant 2.000000e-01 : f32
    %132 = vector.broadcast %cst_52 : f32 to vector<48x1xf32>
    %133 = arith.mulf %132, %129 : vector<48x1xf32>
    %134 = arith.select %131, %129, %133 : vector<48x1xi1>, vector<48x1xf32>
    %cst_53 = arith.constant -1.000000e+30 : f32
    %135 = vector.shape_cast %134 : vector<48x1xf32> to vector<48x1xf32>
    %136 = vector.broadcast %135 : vector<48x1xf32> to vector<48x16xf32>
    %137 = vector.broadcast %cst_53 : f32 to vector<48x16xf32>
    %138 = arith.select %10, %136, %137 : vector<48x16xi1>, vector<48x16xf32>
    %cst_54 = arith.constant dense<0xFF800000> : vector<16xf32>
    %139 = vector.multi_reduction <maximumf>, %138, %cst_54 [0] : vector<48x16xf32> to vector<16xf32>
    %140 = vector.shape_cast %139 : vector<16xf32> to vector<1x16xf32>
    %cst_55 = arith.constant -1.000000e+30 : f32
    %141 = vector.shape_cast %140 : vector<1x16xf32> to vector<1x16xf32>
    %142 = vector.broadcast %141 : vector<1x16xf32> to vector<48x16xf32>
    %143 = vector.broadcast %cst_55 : f32 to vector<48x16xf32>
    %144 = arith.select %10, %142, %143 : vector<48x16xi1>, vector<48x16xf32>
    %cst_56 = arith.constant dense<0xFF800000> : vector<48xf32>
    %145 = vector.multi_reduction <maximumf>, %144, %cst_56 [1] : vector<48x16xf32> to vector<48xf32>
    %146 = vector.shape_cast %145 : vector<48xf32> to vector<48x1xf32>
    %147 = arith.subf %134, %146 : vector<48x1xf32>
    %148 = math.exp %147 : vector<48x1xf32>
    %c32_i32 = arith.constant 32 : i32
    %149 = vector.broadcast %c32_i32 : i32 to vector<1x128xi32>
    %150 = arith.cmpi eq, %0, %149 : vector<1x128xi32>
    %151 = vector.broadcast %148 : vector<48x1xf32> to vector<48x128xf32>
    %152 = arith.mulf %107, %151 : vector<48x128xf32>
    %153 = vector.shape_cast %150 : vector<1x128xi1> to vector<1x128xi1>
    %154 = vector.broadcast %153 : vector<1x128xi1> to vector<48x128xi1>
    %155 = vector.shape_cast %148 : vector<48x1xf32> to vector<48x1xf32>
    %156 = vector.broadcast %155 : vector<48x1xf32> to vector<48x128xf32>
    %157 = arith.select %154, %156, %152 : vector<48x128xi1>, vector<48x128xf32>
    %158 = arith.truncf %157 : vector<48x128xf32> to vector<48x128xbf16>
    %cst_57 = arith.constant dense<0.000000e+00> : vector<16x128xf32>
    %159 = tpu.matmul %17, %158, %cst_57 {dimension_numbers = #tpu.dot_dimension_numbers<[1], [0], [0], [1], [0, 0, 1, 1], [], []>} : vector<16x48xbf16>, vector<48x128xbf16>, vector<16x128xf32> -> vector<16x128xf32>
    %160 = vector.extract_strided_slice %159 {offsets = [0, 32], sizes = [16, 1], strides = [1, 1]} : vector<16x128xf32> to vector<16x1xf32>
    %161 = tpu.reciprocal %160 {approx = true} : vector<16x1xf32> -> vector<16x1xf32>
    %162 = vector.broadcast %161 : vector<16x1xf32> to vector<16x128xf32>
    %163 = arith.mulf %159, %162 : vector<16x128xf32>
    %c32_i32_58 = arith.constant 32 : i32
    %164 = vector.broadcast %c32_i32_58 : i32 to vector<1x128xi32>
    %165 = arith.cmpi slt, %0, %164 : vector<1x128xi32>
    %c0_59 = arith.constant 0 : index
    %c0_60 = arith.constant 0 : index
    %166 = vector.load %arg15[%c0_59, %c0_60] : memref<1x128xf32, #tpu.memory_space<vmem>>, vector<1x128xf32>
    %167 = vector.broadcast %166 : vector<1x128xf32> to vector<16x128xf32>
    %168 = arith.addf %163, %167 : vector<16x128xf32>
    %cst_61 = arith.constant 0.000000e+00 : f32
    %169 = vector.shape_cast %165 : vector<1x128xi1> to vector<1x128xi1>
    %170 = vector.broadcast %169 : vector<1x128xi1> to vector<16x128xi1>
    %171 = vector.broadcast %cst_61 : f32 to vector<16x128xf32>
    %172 = arith.select %170, %168, %171 : vector<16x128xi1>, vector<16x128xf32>
    %cst_62 = arith.constant 0.000000e+00 : f32
    %173 = vector.broadcast %cst_62 : f32 to vector<16x128xf32>
    %174 = arith.maximumf %172, %173 : vector<16x128xf32>
    %175 = arith.truncf %174 : vector<16x128xf32> to vector<16x128xbf16>
    %c0_63 = arith.constant 0 : index
    %c0_64 = arith.constant 0 : index
    %176 = vector.load %arg16[%c0_63, %c0_64] : memref<128x256xbf16, #tpu.memory_space<vmem>>, vector<128x256xbf16>
    %cst_65 = arith.constant dense<0.000000e+00> : vector<16x256xf32>
    %177 = tpu.matmul %175, %176, %cst_65 {dimension_numbers = #tpu.dot_dimension_numbers<[1], [0], [0], [1], [0, 0, 1, 1], [], []>} : vector<16x128xbf16>, vector<128x256xbf16>, vector<16x256xf32> -> vector<16x256xf32>
    %178 = arith.truncf %177 : vector<16x256xf32> to vector<16x256xbf16>
    %179 = tpu.iota {dimensions = array<i32: 1>} : vector<128x16xi32>
    %c0_66 = arith.constant 0 : index
    %c0_67 = arith.constant 0 : index
    %180 = vector.load %arg5[%c0_66, %c0_67] : memref<128x1xi32, #tpu.memory_space<vmem>>, vector<128x1xi32>
    %181 = vector.broadcast %180 : vector<128x1xi32> to vector<128x16xi32>
    %182 = arith.cmpi eq, %181, %179 : vector<128x16xi32>
    %183 = arith.extui %182 : vector<128x16xi1> to vector<128x16xi32>
    %184 = arith.sitofp %183 : vector<128x16xi32> to vector<128x16xf32>
    %185 = arith.truncf %184 : vector<128x16xf32> to vector<128x16xbf16>
    %c0_68 = arith.constant 0 : index
    %c0_69 = arith.constant 0 : index
    %186 = vector.load %arg6[%c0_68, %c0_69] : memref<128x1xi32, #tpu.memory_space<vmem>>, vector<128x1xi32>
    %187 = vector.broadcast %186 : vector<128x1xi32> to vector<128x16xi32>
    %188 = arith.cmpi eq, %187, %179 : vector<128x16xi32>
    %189 = arith.extui %188 : vector<128x16xi1> to vector<128x16xi32>
    %190 = arith.sitofp %189 : vector<128x16xi32> to vector<128x16xf32>
    %191 = arith.truncf %190 : vector<128x16xf32> to vector<128x16xbf16>
    %192 = vector.extract_strided_slice %178 {offsets = [0, 0], sizes = [16, 128], strides = [1, 1]} : vector<16x256xbf16> to vector<16x128xbf16>
    %cst_70 = arith.constant dense<0.000000e+00> : vector<128x128xf32>
    %193 = tpu.matmul %185, %192, %cst_70 {dimension_numbers = #tpu.dot_dimension_numbers<[1], [0], [0], [1], [0, 0, 1, 1], [], []>} : vector<128x16xbf16>, vector<16x128xbf16>, vector<128x128xf32> -> vector<128x128xf32>
    %194 = vector.extract_strided_slice %178 {offsets = [0, 128], sizes = [16, 128], strides = [1, 1]} : vector<16x256xbf16> to vector<16x128xbf16>
    %cst_71 = arith.constant dense<0.000000e+00> : vector<128x128xf32>
    %195 = tpu.matmul %191, %194, %cst_71 {dimension_numbers = #tpu.dot_dimension_numbers<[1], [0], [0], [1], [0, 0, 1, 1], [], []>} : vector<128x16xbf16>, vector<16x128xbf16>, vector<128x128xf32> -> vector<128x128xf32>
    %196 = arith.addf %193, %195 : vector<128x128xf32>
    %c0_72 = arith.constant 0 : index
    %c0_73 = arith.constant 0 : index
    %197 = vector.load %arg7[%c0_72, %c0_73] : memref<128x128xf32, #tpu.memory_space<vmem>>, vector<128x128xf32>
    %198 = arith.truncf %197 : vector<128x128xf32> to vector<128x128xbf16>
    %c0_74 = arith.constant 0 : index
    %c0_75 = arith.constant 0 : index
    %199 = vector.load %arg17[%c0_74, %c0_75] : memref<128x128xbf16, #tpu.memory_space<vmem>>, vector<128x128xbf16>
    %cst_76 = arith.constant dense<0.000000e+00> : vector<128x128xf32>
    %200 = tpu.matmul %198, %199, %cst_76 {dimension_numbers = #tpu.dot_dimension_numbers<[1], [0], [0], [1], [0, 0, 1, 1], [], []>} : vector<128x128xbf16>, vector<128x128xbf16>, vector<128x128xf32> -> vector<128x128xf32>
    %201 = arith.addf %196, %200 : vector<128x128xf32>
    %c0_77 = arith.constant 0 : index
    %c0_78 = arith.constant 0 : index
    %202 = vector.load %arg18[%c0_77, %c0_78] : memref<1x128xf32, #tpu.memory_space<vmem>>, vector<1x128xf32>
    %203 = vector.broadcast %202 : vector<1x128xf32> to vector<128x128xf32>
    %204 = arith.addf %201, %203 : vector<128x128xf32>
    %cst_79 = arith.constant 0.000000e+00 : f32
    %205 = vector.broadcast %cst_79 : f32 to vector<128x128xf32>
    %206 = arith.maximumf %204, %205 : vector<128x128xf32>
    %c0_80 = arith.constant 0 : index
    %c0_81 = arith.constant 0 : index
    %207 = vector.load %arg19[%c0_80, %c0_81] : memref<1x128xbf16, #tpu.memory_space<vmem>>, vector<1x128xbf16>
    %208 = arith.truncf %206 : vector<128x128xf32> to vector<128x128xbf16>
    %cst_82 = arith.constant dense<0.000000e+00> : vector<1x128xf32>
    %209 = tpu.matmul %207, %208, %cst_82 {dimension_numbers = #tpu.dot_dimension_numbers<[1], [1], [0], [0], [0, 0, 1, 0], [], []>} : vector<1x128xbf16>, vector<128x128xbf16>, vector<1x128xf32> -> vector<1x128xf32>
    %c0_83 = arith.constant 0 : index
    %c0_84 = arith.constant 0 : index
    %210 = vector.load %arg20[%c0_83, %c0_84] : memref<1x1xf32, #tpu.memory_space<vmem>>, vector<1x1xf32>
    %211 = vector.broadcast %210 : vector<1x1xf32> to vector<1x128xf32>
    %212 = arith.addf %209, %211 : vector<1x128xf32>
    %c0_85 = arith.constant 0 : index
    %c0_86 = arith.constant 0 : index
    %213 = vector.load %arg21[%c0_85, %c0_86] : memref<1x128xf32, #tpu.memory_space<vmem>>, vector<1x128xf32>
    tpu.vector_store %arg21[%c0_85, %c0_86], %212 {strides = array<i32>} : memref<1x128xf32, #tpu.memory_space<vmem>>, vector<1x128xf32>,
    return
  }
}

</mosaic_0001>

<llo_original>
// kernel: edge_prediction_gnn.1
$region0: #{edge_prediction_gnn.1}
  #allocation0 [shape = 'u32[]', space=smem, size = 0x4, offset = 0x4, fixed_abs, tag = 'smem constant byte address 0x4 - core index']
  #allocation1 [shape = 'u32[144,128]{1,0:T(1,128)}', space=vmem, size = 0x12000, scoped, tag = 'internal scratch']
  #allocation2 [shape = 'f32[1,1]{1,0:T(1,128)S(1)}', space=vmem, size = 0x200, scoped, tag = 'scoped memory for edge_prediction_gnn.1']
  %s0 = inlined_call_operand.hbm [shape: f32[16,8], index: 0, kind: input, shape index: {}]
  %s1 = inlined_call_operand.hbm [shape: s32[48,1], index: 1, kind: input, shape index: {}]
  %s2 = inlined_call_operand.hbm [shape: s32[48,1], index: 2, kind: input, shape index: {}]
  %s3 = inlined_call_operand.hbm [shape: s32[1,48], index: 3, kind: input, shape index: {}]
  %s4 = inlined_call_operand.hbm [shape: f32[48,128], index: 4, kind: input, shape index: {}]
  %s5 = inlined_call_operand.hbm [shape: s32[128,1], index: 5, kind: input, shape index: {}]
  %s6 = inlined_call_operand.hbm [shape: s32[128,1], index: 6, kind: input, shape index: {}]
  %s7 = inlined_call_operand.hbm [shape: f32[128,128], index: 7, kind: input, shape index: {}]
  %s8 = inlined_call_operand.hbm [shape: bf16[8,128], index: 8, kind: input, shape index: {}]
  %s9 = inlined_call_operand.hbm [shape: bf16[1,128], index: 9, kind: input, shape index: {}]
  %s10 = inlined_call_operand.hbm [shape: f32[1,128], index: 10, kind: input, shape index: {}]
  %s11 = inlined_call_operand.hbm [shape: f32[1,128], index: 11, kind: input, shape index: {}]
  %s12 = inlined_call_operand.hbm [shape: bf16[128,128], index: 12, kind: input, shape index: {}]
  %s13 = inlined_call_operand.hbm [shape: bf16[1,128], index: 13, kind: input, shape index: {}]
  %s14 = inlined_call_operand.hbm [shape: f32[1,128], index: 14, kind: input, shape index: {}]
  %s15 = inlined_call_operand.hbm [shape: f32[1,128], index: 15, kind: input, shape index: {}]
  %s16 = inlined_call_operand.hbm [shape: bf16[128,256], index: 16, kind: input, shape index: {}]
  %s17 = inlined_call_operand.hbm [shape: bf16[128,128], index: 17, kind: input, shape index: {}]
  %s18 = inlined_call_operand.hbm [shape: f32[1,128], index: 18, kind: input, shape index: {}]
  %s19 = inlined_call_operand.hbm [shape: bf16[1,128], index: 19, kind: input, shape index: {}]
  %s20 = inlined_call_operand.<no memory space> [shape: f32[1,1], index: 20, kind: input, shape index: {}]
  %s21 = inlined_call_operand.hbm [shape: f32[1,128], index: 21, kind: output, shape index: {}]
  %s22 = sld [smem:[#allocation0]]
  $region174: #{edge_prediction_gnn.1} parent=0
    _
  %s24 = ssub.s32 1, %s22
  %s25 = scalar_select 0, %s24, %s22
  %v26 = vstv %s20
  %27 = vst [vmem:[#allocation2] sm:$0x1] %v26
  $region1: #{edge_prediction_gnn.1} parent=0
    #allocation3 [shape = 'u8[8192]{0}', space=vmem, size = 0x2000, scoped, tag = 'input window, operand 0, single buffered']
    #allocation4 [shape = 's32[1]{0}', space=sflag, size = 0x4, scoped, tag = 'scoped memory for edge_prediction_gnn.1']
    #allocation5 [shape = 's32[1]{0}', space=sflag, size = 0x4, scoped, tag = 'scoped memory for edge_prediction_gnn.1']
    #allocation6 [shape = 'u8[24576]{0}', space=vmem, size = 0x6000, scoped, tag = 'input window, operand 1, single buffered']
    #allocation7 [shape = 's32[1]{0}', space=sflag, size = 0x4, scoped, tag = 'scoped memory for edge_prediction_gnn.1']
    #allocation8 [shape = 'u8[24576]{0}', space=vmem, size = 0x6000, scoped, tag = 'input window, operand 2, single buffered']
    #allocation9 [shape = 'u8[512]{0}', space=vmem, size = 0x400, scoped, tag = 'input window, operand 3, single buffered']
    #allocation10 [shape = 's32[1]{0}', space=sflag, size = 0x4, scoped, tag = 'scoped memory for edge_prediction_gnn.1']
    #allocation11 [shape = 'u8[24576]{0}', space=vmem, size = 0x6000, scoped, tag = 'input window, operand 4, single buffered']
    #allocation12 [shape = 'u8[65536]{0}', space=vmem, size = 0x10000, scoped, tag = 'input window, operand 5, single buffered']
    #allocation13 [shape = 's32[1]{0}', space=sflag, size = 0x4, scoped, tag = 'scoped memory for edge_prediction_gnn.1']
    #allocation14 [shape = 'u8[65536]{0}', space=vmem, size = 0x10000, scoped, tag = 'input window, operand 6, single buffered']
    #allocation15 [shape = 'u8[65536]{0}', space=vmem, size = 0x10000, scoped, tag = 'input window, operand 7, single buffered']
    #allocation16 [shape = 's32[1]{0}', space=sflag, size = 0x4, scoped, tag = 'scoped memory for edge_prediction_gnn.1']
    #allocation17 [shape = 'u8[2048]{0}', space=vmem, size = 0x800, scoped, tag = 'input window, operand 8, single buffered']
    #allocation18 [shape = 'u8[512]{0}', space=vmem, size = 0x400, scoped, tag = 'input window, operand 9, single buffered']
    #allocation19 [shape = 's32[1]{0}', space=sflag, size = 0x4, scoped, tag = 'scoped memory for edge_prediction_gnn.1']
    #allocation20 [shape = 'u8[512]{0}', space=vmem, size = 0x400, scoped, tag = 'input window, operand 10, single buffered']
    #allocation21 [shape = 'u8[512]{0}', space=vmem, size = 0x400, scoped, tag = 'input window, operand 11, single buffered']
    #allocation22 [shape = 's32[1]{0}', space=sflag, size = 0x4, scoped, tag = 'scoped memory for edge_prediction_gnn.1']
    #allocation23 [shape = 'u8[32768]{0}', space=vmem, size = 0x8000, scoped, tag = 'input window, operand 12, single buffered']
    #allocation24 [shape = 'u8[512]{0}', space=vmem, size = 0x400, scoped, tag = 'input window, operand 13, single buffered']
    #allocation25 [shape = 's32[1]{0}', space=sflag, size = 0x4, scoped, tag = 'scoped memory for edge_prediction_gnn.1']
    #allocation26 [shape = 'u8[512]{0}', space=vmem, size = 0x400, scoped, tag = 'input window, operand 14, single buffered']
    #allocation27 [shape = 'u8[512]{0}', space=vmem, size = 0x400, scoped, tag = 'input window, operand 15, single buffered']
    #allocation28 [shape = 's32[1]{0}', space=sflag, size = 0x4, scoped, tag = 'scoped memory for edge_prediction_gnn.1']
    #allocation29 [shape = 'u8[65536]{0}', space=vmem, size = 0x10000, scoped, tag = 'input window, operand 16, single buffered']
    #allocation30 [shape = 'u8[32768]{0}', space=vmem, size = 0x8000, scoped, tag = 'input window, operand 17, single buffered']
    #allocation31 [shape = 's32[1]{0}', space=sflag, size = 0x4, scoped, tag = 'scoped memory for edge_prediction_gnn.1']
    #allocation32 [shape = 'u8[512]{0}', space=vmem, size = 0x400, scoped, tag = 'input window, operand 18, single buffered']
    #allocation33 [shape = 'u8[512]{0}', space=vmem, size = 0x400, scoped, tag = 'input window, operand 19, single buffered']
    #allocation34 [shape = 's32[1]{0}', space=sflag, size = 0x4, scoped, tag = 'scoped memory for edge_prediction_gnn.1']
    #allocation35 [shape = 'u8[512]{0}', space=vmem, size = 0x400, scoped, tag = 'output window, operand 0, single buffered']
    %28 = vsyncpa [#allocation4], 0
    %29 = vsyncpa [#allocation7], 0
    %30 = vsyncpa [#allocation10], 0
    %31 = vsyncpa [#allocation13], 0
    %32 = vsyncpa [#allocation16], 0
    %33 = vsyncpa [#allocation19], 0
    %34 = vsyncpa [#allocation22], 0
    %35 = vsyncpa [#allocation25], 0
    %36 = vsyncpa [#allocation28], 0
    %37 = vsyncpa [#allocation31], 0
    %38 = vsyncpa [#allocation34], 0
    %39 = vsyncpa [#allocation5], 0
    // Predicated region
    $region2: #{edge_prediction_gnn.1} parent=1 // pred_check
      _
    $region3: #{edge_prediction_gnn.1} parent=1 // pred_check_branch
      %41 = sbr.rel (0) target = $region5
    $region4: #{edge_prediction_gnn.1} parent=1 // pred_region
      %s43 = ssub.s32 256, 256
      %44 = vsyncadd [#allocation4], %s43
      %s45 = sshll.u32 [#allocation3], 4
      %s46 = int_to_ptr.vmem [resolvable:$true] %s45
      %51 = dma.hbm_to_vmem [thread:$0]  %s0, 256, %s46, [#allocation4], 128, 128, 8
    $region5: #{edge_prediction_gnn.1} parent=1 // pred_fallthru
      _
    // Predicated region
    $region6: #{edge_prediction_gnn.1} parent=1 // pred_check
      _
    $region7: #{edge_prediction_gnn.1} parent=1 // pred_check_branch
      %53 = sbr.rel (0) target = $region9
    $region8: #{edge_prediction_gnn.1} parent=1 // pred_region
      %s55 = ssub.s32 768, 768
      %56 = vsyncadd [#allocation7], %s55
      %s57 = sshll.u32 [#allocation6], 4
      %s58 = int_to_ptr.vmem [resolvable:$true] %s57
      %63 = dma.hbm_to_vmem [thread:$0]  %s1, 768, %s58, [#allocation7], 128, 128, 8
    $region9: #{edge_prediction_gnn.1} parent=1 // pred_fallthru
      _
    // Predicated region
    $region10: #{edge_prediction_gnn.1} parent=1 // pred_check
      _
    $region11: #{edge_prediction_gnn.1} parent=1 // pred_check_branch
      %65 = sbr.rel (0) target = $region13
    $region12: #{edge_prediction_gnn.1} parent=1 // pred_region
      %s67 = ssub.s32 768, 768
      %68 = vsyncadd [#allocation7], %s67
      %s69 = sshll.u32 [#allocation8], 4
      %s70 = int_to_ptr.vmem [resolvable:$true] %s69
      %75 = dma.hbm_to_vmem [thread:$0]  %s2, 768, %s70, [#allocation7], 128, 128, 8
    $region13: #{edge_prediction_gnn.1} parent=1 // pred_fallthru
      _
    // Predicated region
    $region14: #{edge_prediction_gnn.1} parent=1 // pred_check
      _
    $region15: #{edge_prediction_gnn.1} parent=1 // pred_check_branch
      %77 = sbr.rel (0) target = $region17
    $region16: #{edge_prediction_gnn.1} parent=1 // pred_region
      %s79 = ssub.s32 16, 16
      %80 = vsyncadd [#allocation10], %s79
      %s82 = sshll.u32 [#allocation9], 4
      %s83 = int_to_ptr.vmem [resolvable:$true] %s82
      %85 = dma.hbm_to_vmem [thread:$0]  %s3, 16, %s83, [#allocation10]
    $region17: #{edge_prediction_gnn.1} parent=1 // pred_fallthru
      _
    // Predicated region
    $region18: #{edge_prediction_gnn.1} parent=1 // pred_check
      _
    $region19: #{edge_prediction_gnn.1} parent=1 // pred_check_branch
      %87 = sbr.rel (0) target = $region21
    $region20: #{edge_prediction_gnn.1} parent=1 // pred_region
      %s89 = ssub.s32 768, 768
      %90 = vsyncadd [#allocation10], %s89
      %s91 = sshll.u32 [#allocation11], 4
      %s92 = int_to_ptr.vmem [resolvable:$true] %s91
      %97 = dma.hbm_to_vmem [thread:$0]  %s4, 768, %s92, [#allocation10], 128, 128, 8
    $region21: #{edge_prediction_gnn.1} parent=1 // pred_fallthru
      _
    // Predicated region
    $region22: #{edge_prediction_gnn.1} parent=1 // pred_check
      _
    $region23: #{edge_prediction_gnn.1} parent=1 // pred_check_branch
      %99 = sbr.rel (0) target = $region25
    $region24: #{edge_prediction_gnn.1} parent=1 // pred_region
      %s101 = ssub.s32 2048, 2048
      %102 = vsyncadd [#allocation13], %s101
      %s103 = sshll.u32 [#allocation12], 4
      %s104 = int_to_ptr.vmem [resolvable:$true] %s103
      %109 = dma.hbm_to_vmem [thread:$0]  %s5, 2048, %s104, [#allocation13], 128, 128, 8
    $region25: #{edge_prediction_gnn.1} parent=1 // pred_fallthru
      _
    // Predicated region
    $region26: #{edge_prediction_gnn.1} parent=1 // pred_check
      _
    $region27: #{edge_prediction_gnn.1} parent=1 // pred_check_branch
      %111 = sbr.rel (0) target = $region29
    $region28: #{edge_prediction_gnn.1} parent=1 // pred_region
      %s113 = ssub.s32 2048, 2048
      %114 = vsyncadd [#allocation13], %s113
      %s115 = sshll.u32 [#allocation14], 4
      %s116 = int_to_ptr.vmem [resolvable:$true] %s115
      %121 = dma.hbm_to_vmem [thread:$0]  %s6, 2048, %s116, [#allocation13], 128, 128, 8
    $region29: #{edge_prediction_gnn.1} parent=1 // pred_fallthru
      _
    // Predicated region
    $region30: #{edge_prediction_gnn.1} parent=1 // pred_check
      _
    $region31: #{edge_prediction_gnn.1} parent=1 // pred_check_branch
      %123 = sbr.rel (0) target = $region33
    $region32: #{edge_prediction_gnn.1} parent=1 // pred_region
      %s125 = ssub.s32 2048, 2048
      %126 = vsyncadd [#allocation16], %s125
      %s127 = sshll.u32 [#allocation15], 4
      %s128 = int_to_ptr.vmem [resolvable:$true] %s127
      %133 = dma.hbm_to_vmem [thread:$0]  %s7, 2048, %s128, [#allocation16], 128, 128, 8
    $region33: #{edge_prediction_gnn.1} parent=1 // pred_fallthru
      _
    // Predicated region
    $region34: #{edge_prediction_gnn.1} parent=1 // pred_check
      _
    $region35: #{edge_prediction_gnn.1} parent=1 // pred_check_branch
      %135 = sbr.rel (0) target = $region37
    $region36: #{edge_prediction_gnn.1} parent=1 // pred_region
      %s137 = ssub.s32 64, 64
      %138 = vsyncadd [#allocation16], %s137
      %s140 = sshll.u32 [#allocation17], 4
      %s141 = int_to_ptr.vmem [resolvable:$true] %s140
      %143 = dma.hbm_to_vmem [thread:$0]  %s8, 64, %s141, [#allocation16]
    $region37: #{edge_prediction_gnn.1} parent=1 // pred_fallthru
      _
    // Predicated region
    $region38: #{edge_prediction_gnn.1} parent=1 // pred_check
      _
    $region39: #{edge_prediction_gnn.1} parent=1 // pred_check_branch
      %145 = sbr.rel (0) target = $region41
    $region40: #{edge_prediction_gnn.1} parent=1 // pred_region
      %s147 = ssub.s32 16, 16
      %148 = vsyncadd [#allocation19], %s147
      %s150 = sshll.u32 [#allocation18], 4
      %s151 = int_to_ptr.vmem [resolvable:$true] %s150
      %153 = dma.hbm_to_vmem [thread:$0]  %s9, 16, %s151, [#allocation19]
    $region41: #{edge_prediction_gnn.1} parent=1 // pred_fallthru
      _
    // Predicated region
    $region42: #{edge_prediction_gnn.1} parent=1 // pred_check
      _
    $region43: #{edge_prediction_gnn.1} parent=1 // pred_check_branch
      %155 = sbr.rel (0) target = $region45
    $region44: #{edge_prediction_gnn.1} parent=1 // pred_region
      %s157 = ssub.s32 16, 16
      %158 = vsyncadd [#allocation19], %s157
      %s160 = sshll.u32 [#allocation20], 4
      %s161 = int_to_ptr.vmem [resolvable:$true] %s160
      %163 = dma.hbm_to_vmem [thread:$0]  %s10, 16, %s161, [#allocation19]
    $region45: #{edge_prediction_gnn.1} parent=1 // pred_fallthru
      _
    // Predicated region
    $region46: #{edge_prediction_gnn.1} parent=1 // pred_check
      _
    $region47: #{edge_prediction_gnn.1} parent=1 // pred_check_branch
      %165 = sbr.rel (0) target = $region49
    $region48: #{edge_prediction_gnn.1} parent=1 // pred_region
      %s167 = ssub.s32 16, 16
      %168 = vsyncadd [#allocation22], %s167
      %s170 = sshll.u32 [#allocation21], 4
      %s171 = int_to_ptr.vmem [resolvable:$true] %s170
      %173 = dma.hbm_to_vmem [thread:$0]  %s11, 16, %s171, [#allocation22]
    $region49: #{edge_prediction_gnn.1} parent=1 // pred_fallthru
      _
    // Predicated region
    $region50: #{edge_prediction_gnn.1} parent=1 // pred_check
      _
    $region51: #{edge_prediction_gnn.1} parent=1 // pred_check_branch
      %175 = sbr.rel (0) target = $region53
    $region52: #{edge_prediction_gnn.1} parent=1 // pred_region
      %s177 = ssub.s32 1024, 1024
      %178 = vsyncadd [#allocation22], %s177
      %s179 = sshll.u32 [#allocation23], 4
      %s180 = int_to_ptr.vmem [resolvable:$true] %s179
      %185 = dma.hbm_to_vmem [thread:$0]  %s12, 1024, %s180, [#allocation22], 64, 64, 4
    $region53: #{edge_prediction_gnn.1} parent=1 // pred_fallthru
      _
    // Predicated region
    $region54: #{edge_prediction_gnn.1} parent=1 // pred_check
      _
    $region55: #{edge_prediction_gnn.1} parent=1 // pred_check_branch
      %187 = sbr.rel (0) target = $region57
    $region56: #{edge_prediction_gnn.1} parent=1 // pred_region
      %s189 = ssub.s32 16, 16
      %190 = vsyncadd [#allocation25], %s189
      %s192 = sshll.u32 [#allocation24], 4
      %s193 = int_to_ptr.vmem [resolvable:$true] %s192
      %195 = dma.hbm_to_vmem [thread:$0]  %s13, 16, %s193, [#allocation25]
    $region57: #{edge_prediction_gnn.1} parent=1 // pred_fallthru
      _
    // Predicated region
    $region58: #{edge_prediction_gnn.1} parent=1 // pred_check
      _
    $region59: #{edge_prediction_gnn.1} parent=1 // pred_check_branch
      %197 = sbr.rel (0) target = $region61
    $region60: #{edge_prediction_gnn.1} parent=1 // pred_region
      %s199 = ssub.s32 16, 16
      %200 = vsyncadd [#allocation25], %s199
      %s202 = sshll.u32 [#allocation26], 4
      %s203 = int_to_ptr.vmem [resolvable:$true] %s202
      %205 = dma.hbm_to_vmem [thread:$0]  %s14, 16, %s203, [#allocation25]
    $region61: #{edge_prediction_gnn.1} parent=1 // pred_fallthru
      _
    // Predicated region
    $region62: #{edge_prediction_gnn.1} parent=1 // pred_check
      _
    $region63: #{edge_prediction_gnn.1} parent=1 // pred_check_branch
      %207 = sbr.rel (0) target = $region65
    $region64: #{edge_prediction_gnn.1} parent=1 // pred_region
      %s209 = ssub.s32 16, 16
      %210 = vsyncadd [#allocation28], %s209
      %s212 = sshll.u32 [#allocation27], 4
      %s213 = int_to_ptr.vmem [resolvable:$true] %s212
      %215 = dma.hbm_to_vmem [thread:$0]  %s15, 16, %s213, [#allocation28]
    $region65: #{edge_prediction_gnn.1} parent=1 // pred_fallthru
      _
    // Predicated region
    $region66: #{edge_prediction_gnn.1} parent=1 // pred_check
      _
    $region67: #{edge_prediction_gnn.1} parent=1 // pred_check_branch
      %217 = sbr.rel (0) target = $region69
    $region68: #{edge_prediction_gnn.1} parent=1 // pred_region
      %s219 = ssub.s32 2048, 2048
      %220 = vsyncadd [#allocation28], %s219
      %s221 = sshll.u32 [#allocation29], 4
      %s222 = int_to_ptr.vmem [resolvable:$true] %s221
      %227 = dma.hbm_to_vmem [thread:$0]  %s16, 2048, %s222, [#allocation28], 128, 128, 8
    $region69: #{edge_prediction_gnn.1} parent=1 // pred_fallthru
      _
    // Predicated region
    $region70: #{edge_prediction_gnn.1} parent=1 // pred_check
      _
    $region71: #{edge_prediction_gnn.1} parent=1 // pred_check_branch
      %229 = sbr.rel (0) target = $region73
    $region72: #{edge_prediction_gnn.1} parent=1 // pred_region
      %s231 = ssub.s32 1024, 1024
      %232 = vsyncadd [#allocation31], %s231
      %s233 = sshll.u32 [#allocation30], 4
      %s234 = int_to_ptr.vmem [resolvable:$true] %s233
      %239 = dma.hbm_to_vmem [thread:$0]  %s17, 1024, %s234, [#allocation31], 64, 64, 4
    $region73: #{edge_prediction_gnn.1} parent=1 // pred_fallthru
      _
    // Predicated region
    $region74: #{edge_prediction_gnn.1} parent=1 // pred_check
      _
    $region75: #{edge_prediction_gnn.1} parent=1 // pred_check_branch
      %241 = sbr.rel (0) target = $region77
    $region76: #{edge_prediction_gnn.1} parent=1 // pred_region
      %s243 = ssub.s32 16, 16
      %244 = vsyncadd [#allocation31], %s243
      %s246 = sshll.u32 [#allocation32], 4
      %s247 = int_to_ptr.vmem [resolvable:$true] %s246
      %249 = dma.hbm_to_vmem [thread:$0]  %s18, 16, %s247, [#allocation31]
    $region77: #{edge_prediction_gnn.1} parent=1 // pred_fallthru
      _
    // Predicated region
    $region78: #{edge_prediction_gnn.1} parent=1 // pred_check
      _
    $region79: #{edge_prediction_gnn.1} parent=1 // pred_check_branch
      %251 = sbr.rel (0) target = $region81
    $region80: #{edge_prediction_gnn.1} parent=1 // pred_region
      %s253 = ssub.s32 16, 16
      %254 = vsyncadd [#allocation34], %s253
      %s256 = sshll.u32 [#allocation33], 4
      %s257 = int_to_ptr.vmem [resolvable:$true] %s256
      %259 = dma.hbm_to_vmem [thread:$0]  %s19, 16, %s257, [#allocation34]
    $region81: #{edge_prediction_gnn.1} parent=1 // pred_fallthru
      _
    // Predicated region
    $region82: #{edge_prediction_gnn.1} parent=1 // pred_check
      _
    $region83: #{edge_prediction_gnn.1} parent=1 // pred_check_branch
      %261 = sbr.rel (0) target = $region85
    $region84: #{edge_prediction_gnn.1} parent=1 // pred_region
      _
    $region85: #{edge_prediction_gnn.1} parent=1 // pred_fallthru
      _
    // Predicated region
    $region86: #{edge_prediction_gnn.1} parent=1 // pred_check
      _
    $region87: #{edge_prediction_gnn.1} parent=1 // pred_check_branch
      %263 = sbr.rel (0) target = $region89
    $region88: #{edge_prediction_gnn.1} parent=1 // pred_region
      %264 = dma.done [#allocation4], 256
    $region89: #{edge_prediction_gnn.1} parent=1 // pred_fallthru
      _
    // Predicated region
    $region90: #{edge_prediction_gnn.1} parent=1 // pred_check
      _
    $region91: #{edge_prediction_gnn.1} parent=1 // pred_check_branch
      %266 = sbr.rel (0) target = $region93
    $region92: #{edge_prediction_gnn.1} parent=1 // pred_region
      %267 = dma.done [#allocation7], 768
    $region93: #{edge_prediction_gnn.1} parent=1 // pred_fallthru
      _
    // Predicated region
    $region94: #{edge_prediction_gnn.1} parent=1 // pred_check
      _
    $region95: #{edge_prediction_gnn.1} parent=1 // pred_check_branch
      %269 = sbr.rel (0) target = $region97
    $region96: #{edge_prediction_gnn.1} parent=1 // pred_region
      %270 = dma.done [#allocation7], 768
    $region97: #{edge_prediction_gnn.1} parent=1 // pred_fallthru
      _
    // Predicated region
    $region98: #{edge_prediction_gnn.1} parent=1 // pred_check
      _
    $region99: #{edge_prediction_gnn.1} parent=1 // pred_check_branch
      %272 = sbr.rel (0) target = $region101
    $region100: #{edge_prediction_gnn.1} parent=1 // pred_region
      %273 = dma.done [#allocation10], 16
    $region101: #{edge_prediction_gnn.1} parent=1 // pred_fallthru
      _
    // Predicated region
    $region102: #{edge_prediction_gnn.1} parent=1 // pred_check
      _
    $region103: #{edge_prediction_gnn.1} parent=1 // pred_check_branch
      %275 = sbr.rel (0) target = $region105
    $region104: #{edge_prediction_gnn.1} parent=1 // pred_region
      %276 = dma.done [#allocation10], 768
    $region105: #{edge_prediction_gnn.1} parent=1 // pred_fallthru
      _
    // Predicated region
    $region106: #{edge_prediction_gnn.1} parent=1 // pred_check
      _
    $region107: #{edge_prediction_gnn.1} parent=1 // pred_check_branch
      %278 = sbr.rel (0) target = $region109
    $region108: #{edge_prediction_gnn.1} parent=1 // pred_region
      %279 = dma.done [#allocation13], 2048
    $region109: #{edge_prediction_gnn.1} parent=1 // pred_fallthru
      _
    // Predicated region
    $region110: #{edge_prediction_gnn.1} parent=1 // pred_check
      _
    $region111: #{edge_prediction_gnn.1} parent=1 // pred_check_branch
      %281 = sbr.rel (0) target = $region113
    $region112: #{edge_prediction_gnn.1} parent=1 // pred_region
      %282 = dma.done [#allocation13], 2048
    $region113: #{edge_prediction_gnn.1} parent=1 // pred_fallthru
      _
    // Predicated region
    $region114: #{edge_prediction_gnn.1} parent=1 // pred_check
      _
    $region115: #{edge_prediction_gnn.1} parent=1 // pred_check_branch
      %284 = sbr.rel (0) target = $region117
    $region116: #{edge_prediction_gnn.1} parent=1 // pred_region
      %285 = dma.done [#allocation16], 2048
    $region117: #{edge_prediction_gnn.1} parent=1 // pred_fallthru
      _
    // Predicated region
    $region118: #{edge_prediction_gnn.1} parent=1 // pred_check
      _
    $region119: #{edge_prediction_gnn.1} parent=1 // pred_check_branch
      %287 = sbr.rel (0) target = $region121
    $region120: #{edge_prediction_gnn.1} parent=1 // pred_region
      %288 = dma.done [#allocation16], 64
    $region121: #{edge_prediction_gnn.1} parent=1 // pred_fallthru
      _
    // Predicated region
    $region122: #{edge_prediction_gnn.1} parent=1 // pred_check
      _
    $region123: #{edge_prediction_gnn.1} parent=1 // pred_check_branch
      %290 = sbr.rel (0) target = $region125
    $region124: #{edge_prediction_gnn.1} parent=1 // pred_region
      %291 = dma.done [#allocation19], 16
    $region125: #{edge_prediction_gnn.1} parent=1 // pred_fallthru
      _
    // Predicated region
    $region126: #{edge_prediction_gnn.1} parent=1 // pred_check
      _
    $region127: #{edge_prediction_gnn.1} parent=1 // pred_check_branch
      %293 = sbr.rel (0) target = $region129
    $region128: #{edge_prediction_gnn.1} parent=1 // pred_region
      %294 = dma.done [#allocation19], 16
    $region129: #{edge_prediction_gnn.1} parent=1 // pred_fallthru
      _
    // Predicated region
    $region130: #{edge_prediction_gnn.1} parent=1 // pred_check
      _
    $region131: #{edge_prediction_gnn.1} parent=1 // pred_check_branch
      %296 = sbr.rel (0) target = $region133
    $region132: #{edge_prediction_gnn.1} parent=1 // pred_region
      %297 = dma.done [#allocation22], 16
    $region133: #{edge_prediction_gnn.1} parent=1 // pred_fallthru
      _
    // Predicated region
    $region134: #{edge_prediction_gnn.1} parent=1 // pred_check
      _
    $region135: #{edge_prediction_gnn.1} parent=1 // pred_check_branch
      %299 = sbr.rel (0) target = $region137
    $region136: #{edge_prediction_gnn.1} parent=1 // pred_region
      %300 = dma.done [#allocation22], 1024
    $region137: #{edge_prediction_gnn.1} parent=1 // pred_fallthru
      _
    // Predicated region
    $region138: #{edge_prediction_gnn.1} parent=1 // pred_check
      _
    $region139: #{edge_prediction_gnn.1} parent=1 // pred_check_branch
      %302 = sbr.rel (0) target = $region141
    $region140: #{edge_prediction_gnn.1} parent=1 // pred_region
      %303 = dma.done [#allocation25], 16
    $region141: #{edge_prediction_gnn.1} parent=1 // pred_fallthru
      _
    // Predicated region
    $region142: #{edge_prediction_gnn.1} parent=1 // pred_check
      _
    $region143: #{edge_prediction_gnn.1} parent=1 // pred_check_branch
      %305 = sbr.rel (0) target = $region145
    $region144: #{edge_prediction_gnn.1} parent=1 // pred_region
      %306 = dma.done [#allocation25], 16
    $region145: #{edge_prediction_gnn.1} parent=1 // pred_fallthru
      _
    // Predicated region
    $region146: #{edge_prediction_gnn.1} parent=1 // pred_check
      _
    $region147: #{edge_prediction_gnn.1} parent=1 // pred_check_branch
      %308 = sbr.rel (0) target = $region149
    $region148: #{edge_prediction_gnn.1} parent=1 // pred_region
      %309 = dma.done [#allocation28], 16
    $region149: #{edge_prediction_gnn.1} parent=1 // pred_fallthru
      _
    // Predicated region
    $region150: #{edge_prediction_gnn.1} parent=1 // pred_check
      _
    $region151: #{edge_prediction_gnn.1} parent=1 // pred_check_branch
      %311 = sbr.rel (0) target = $region153
    $region152: #{edge_prediction_gnn.1} parent=1 // pred_region
      %312 = dma.done [#allocation28], 2048
    $region153: #{edge_prediction_gnn.1} parent=1 // pred_fallthru
      _
    // Predicated region
    $region154: #{edge_prediction_gnn.1} parent=1 // pred_check
      _
    $region155: #{edge_prediction_gnn.1} parent=1 // pred_check_branch
      %314 = sbr.rel (0) target = $region157
    $region156: #{edge_prediction_gnn.1} parent=1 // pred_region
      %315 = dma.done [#allocation31], 1024
    $region157: #{edge_prediction_gnn.1} parent=1 // pred_fallthru
      _
    // Predicated region
    $region158: #{edge_prediction_gnn.1} parent=1 // pred_check
      _
    $region159: #{edge_prediction_gnn.1} parent=1 // pred_check_branch
      %317 = sbr.rel (0) target = $region161
    $region160: #{edge_prediction_gnn.1} parent=1 // pred_region
      %318 = dma.done [#allocation31], 16
    $region161: #{edge_prediction_gnn.1} parent=1 // pred_fallthru
      _
    // Predicated region
    $region162: #{edge_prediction_gnn.1} parent=1 // pred_check
      _
    $region163: #{edge_prediction_gnn.1} parent=1 // pred_check_branch
      %320 = sbr.rel (0) target = $region165
    $region164: #{edge_prediction_gnn.1} parent=1 // pred_region
      %321 = dma.done [#allocation34], 16
    $region165: #{edge_prediction_gnn.1} parent=1 // pred_fallthru
      _
    %v323 = vlaneseq
    %v324 = vand.u32 %v323, 127
    %v325 = vld [vmem:[#allocation6] sm:$0xff]
    %v326 = vld [vmem:[#allocation6 + $0x8] sm:$0xff]
    %v327 = vld [vmem:[#allocation6 + $0x10] sm:$0xff]
    %v328 = vld [vmem:[#allocation6 + $0x18] sm:$0xff]
    %v329 = vld [vmem:[#allocation6 + $0x20] sm:$0xff]
    %v330 = vld [vmem:[#allocation6 + $0x28] sm:$0xff]
    %331 = vset.pattern.permute.xlu0 0
    %332 = vperm.xlu0 %331, %v325
    %v333 = vpop.permute.xlu0 %332
    %334 = vset.pattern.permute.xlu0 0
    %335 = vperm.xlu0 %334, %v326
    %v336 = vpop.permute.xlu0 %335
    %337 = vset.pattern.permute.xlu0 0
    %338 = vperm.xlu0 %337, %v327
    %v339 = vpop.permute.xlu0 %338
    %340 = vset.pattern.permute.xlu0 0
    %341 = vperm.xlu0 %340, %v328
    %v342 = vpop.permute.xlu0 %341
    %343 = vset.pattern.permute.xlu0 0
    %344 = vperm.xlu0 %343, %v329
    %v345 = vpop.permute.xlu0 %344
    %346 = vset.pattern.permute.xlu0 0
    %347 = vperm.xlu0 %346, %v330
    %v348 = vpop.permute.xlu0 %347
    %vm349 = vcmp.eq.s32.totalorder %v333, %v324
    %vm350 = vcmp.eq.s32.totalorder %v336, %v324
    %vm351 = vcmp.eq.s32.totalorder %v339, %v324
    %vm352 = vcmp.eq.s32.totalorder %v342, %v324
    %vm353 = vcmp.eq.s32.totalorder %v345, %v324
    %vm354 = vcmp.eq.s32.totalorder %v348, %v324
    %v355 = vsel %vm349, 1, 0
    %v356 = vsel %vm350, 1, 0
    %v357 = vsel %vm351, 1, 0
    %v358 = vsel %vm352, 1, 0
    %v359 = vsel %vm353, 1, 0
    %v360 = vsel %vm354, 1, 0
    %v361 = vcvt.s32.f32 %v355
    %v362 = vcvt.s32.f32 %v356
    %v363 = vcvt.s32.f32 %v357
    %v364 = vcvt.s32.f32 %v358
    %v365 = vcvt.s32.f32 %v359
    %v366 = vcvt.s32.f32 %v360
    %v367 = vpack.c.bf16 %v362, %v361
    %v368 = vpack.c.bf16 %v364, %v363
    %v369 = vpack.c.bf16 %v366, %v365
    %v370 = vld [vmem:[#allocation8] sm:$0xff]
    %v371 = vld [vmem:[#allocation8 + $0x8] sm:$0xff]
    %v372 = vld [vmem:[#allocation8 + $0x10] sm:$0xff]
    %v373 = vld [vmem:[#allocation8 + $0x18] sm:$0xff]
    %v374 = vld [vmem:[#allocation8 + $0x20] sm:$0xff]
    %v375 = vld [vmem:[#allocation8 + $0x28] sm:$0xff]
    %376 = vset.pattern.permute.xlu0 0
    %377 = vperm.xlu0 %376, %v370
    %v378 = vpop.permute.xlu0 %377
    %379 = vset.pattern.permute.xlu0 0
    %380 = vperm.xlu0 %379, %v371
    %v381 = vpop.permute.xlu0 %380
    %382 = vset.pattern.permute.xlu0 0
    %383 = vperm.xlu0 %382, %v372
    %v384 = vpop.permute.xlu0 %383
    %385 = vset.pattern.permute.xlu0 0
    %386 = vperm.xlu0 %385, %v373
    %v387 = vpop.permute.xlu0 %386
    %388 = vset.pattern.permute.xlu0 0
    %389 = vperm.xlu0 %388, %v374
    %v390 = vpop.permute.xlu0 %389
    %391 = vset.pattern.permute.xlu0 0
    %392 = vperm.xlu0 %391, %v375
    %v393 = vpop.permute.xlu0 %392
    %vm394 = vcmp.eq.s32.totalorder %v378, %v324
    %vm395 = vcmp.eq.s32.totalorder %v381, %v324
    %vm396 = vcmp.eq.s32.totalorder %v384, %v324
    %vm397 = vcmp.eq.s32.totalorder %v387, %v324
    %vm398 = vcmp.eq.s32.totalorder %v390, %v324
    %vm399 = vcmp.eq.s32.totalorder %v393, %v324
    %v400 = vlaneseq
    %v401 = vshrl.u32 %v400, 7
    %v402 = vadd.s32 %v401, 8
    %v403 = vld [vmem:[#allocation9] sm:$0x1]
    %v404 = vlaneseq
    %v405 = vshrl.u32 %v404, 7
    %v406 = vsub.s32 0, %v405
    %v407 = vrot.slane %v403, %v406
    %vm408 = vcmp.eq.s32.totalorder %v407, %v401
    %vm409 = vcmp.eq.s32.totalorder %v407, %v402
    %v410 = vsel %vm408, 1, 0
    %v411 = vsel %vm409, 1, 0
    %v412 = vcvt.s32.f32 %v410
    %v413 = vcvt.s32.f32 %v411
    %v414 = vpack.c.bf16 %v413, %v412
    %v415 = vld [vmem:[#allocation11] sm:$0xff]
    %v416 = vld [vmem:[#allocation11 + $0x8] sm:$0xff]
    %v417 = vld [vmem:[#allocation11 + $0x10] sm:$0xff]
    %v418 = vld [vmem:[#allocation11 + $0x18] sm:$0xff]
    %v419 = vld [vmem:[#allocation11 + $0x20] sm:$0xff]
    %v420 = vld [vmem:[#allocation11 + $0x28] sm:$0xff]
    %v421 = vpack.c.bf16 %v416, %v415
    %v422 = vpack.c.bf16 %v418, %v417
    %v423 = vpack.c.bf16 %v420, %v419
    %vm424 = vcmask 392192
    %v426 = vsel %vm424, %v414, 0
    %428 = vmatprep.subr.bf16.mxu0 0
    %429 = vmatpush1.bf16.msra.mxu0 %v421
    %430 = vmatprep.subr.bf16.mxu0 0
    %431 = vmatpush1.bf16.msra.mxu0 %v422
    %432 = vmatprep.subr.bf16.mxu0 0
    %433 = vmatpush1.bf16.msra.mxu0 %v423
    %434 = vmatprep.subr.bf16.mxu0 0
    %435 = vmatpush1.bf16.msra.mxu0 0
    %436 = vmatprep.subr.bf16.mxu0 0
    %437 = vmatpush1.bf16.msra.mxu0 0
    %438 = vmatprep.subr.bf16.mxu0 0
    %439 = vmatpush1.bf16.msra.mxu0 0
    %440 = vmatprep.subr.bf16.mxu0 0
    %441 = vmatpush1.bf16.msra.mxu0 0
    %442 = vmatprep.subr.bf16.mxu0 0
    %443 = vmatpush1.bf16.msra.mxu0 0
    %444 = vmatprep.subr.bf16.mxu0 0
    %445 = vmatpush1.bf16.msra.mxu0 0
    %446 = vmatprep.subr.bf16.mxu0 0
    %447 = vmatpush1.bf16.msra.mxu0 0
    %448 = vmatprep.subr.bf16.mxu0 0
    %449 = vmatpush1.bf16.msra.mxu0 0
    %450 = vmatprep.subr.bf16.mxu0 0
    %451 = vmatpush1.bf16.msra.mxu0 0
    %452 = vmatprep.subr.bf16.mxu0 0
    %453 = vmatpush1.bf16.msra.mxu0 0
    %454 = vmatprep.subr.bf16.mxu0 0
    %455 = vmatpush1.bf16.msra.mxu0 0
    %456 = vmatprep.subr.bf16.mxu0 0
    %457 = vmatpush1.bf16.msra.mxu0 0
    %458 = vmatprep.subr.bf16.mxu0 0
    %459 = vmatpush1.bf16.msra.mxu0 0
    %460 = vmatprep.mubr.bf16.mxu0 0
    %461 = vmatmul.mubr.bf16.gmra.mrb[0].mxu0 %v426
    %v462 = vpop.f32.mrb[0].mxu0
    %v463 = vadd.f32 0.0, %v462
    %v464 = vpop.f32.mrb[0].mxu0
    %v465 = vpop.f32.mrb[0].mxu0
    %v466 = vadd.f32 0.0, %v465
    %v467 = vpop.f32.mrb[0].mxu0
    %468 = vdwg.mxu0
    %v469 = vmax.f32 %v463, 1.0
    %v470 = vmax.f32 %v466, 1.0
    %v471 = vrcp.pop %v469
    %v472 = vmul.f32 1.0, %v471
    %v473 = vrcp.pop %v470
    %v474 = vmul.f32 1.0, %v473
    %v475 = vld [vmem:[#allocation3] sm:$0xff]
    %v476 = vld [vmem:[#allocation3 + $0x8] sm:$0xff]
    %v477 = vpack.c.bf16 %v476, %v475
    %v478 = vld [vmem:[#allocation17] sm:$0xf]
    %vm479 = vcmask 64512
    %v481 = vsel %vm479, %v477, 0
    %vm483 = vcmask 1043456
    %v485 = vsel %vm483, %v478, 0
    %487 = vmatprep.subr.bf16.mxu0 0
    %488 = vmatpush1.bf16.msra.mxu0 %v485
    %489 = vmatprep.subr.bf16.mxu0 0
    %490 = vmatpush1.bf16.msra.mxu0 0
    %491 = vmatprep.subr.bf16.mxu0 0
    %492 = vmatpush1.bf16.msra.mxu0 0
    %493 = vmatprep.subr.bf16.mxu0 0
    %494 = vmatpush1.bf16.msra.mxu0 0
    %495 = vmatprep.subr.bf16.mxu0 0
    %496 = vmatpush1.bf16.msra.mxu0 0
    %497 = vmatprep.subr.bf16.mxu0 0
    %498 = vmatpush1.bf16.msra.mxu0 0
    %499 = vmatprep.subr.bf16.mxu0 0
    %500 = vmatpush1.bf16.msra.mxu0 0
    %501 = vmatprep.subr.bf16.mxu0 0
    %502 = vmatpush1.bf16.msra.mxu0 0
    %503 = vmatprep.subr.bf16.mxu0 0
    %504 = vmatpush1.bf16.msra.mxu0 0
    %505 = vmatprep.subr.bf16.mxu0 0
    %506 = vmatpush1.bf16.msra.mxu0 0
    %507 = vmatprep.subr.bf16.mxu0 0
    %508 = vmatpush1.bf16.msra.mxu0 0
    %509 = vmatprep.subr.bf16.mxu0 0
    %510 = vmatpush1.bf16.msra.mxu0 0
    %511 = vmatprep.subr.bf16.mxu0 0
    %512 = vmatpush1.bf16.msra.mxu0 0
    %513 = vmatprep.subr.bf16.mxu0 0
    %514 = vmatpush1.bf16.msra.mxu0 0
    %515 = vmatprep.subr.bf16.mxu0 0
    %516 = vmatpush1.bf16.msra.mxu0 0
    %517 = vmatprep.subr.bf16.mxu0 0
    %518 = vmatpush1.bf16.msra.mxu0 0
    %519 = vmatprep.mubr.bf16.mxu0 0
    %520 = vmatmul.mubr.bf16.gmra.mrb[0].mxu0 %v481
    %v521 = vpop.f32.mrb[0].mxu0
    %v522 = vadd.f32 0.0, %v521
    %v523 = vpop.f32.mrb[0].mxu0
    %v524 = vpop.f32.mrb[0].mxu0
    %v525 = vadd.f32 0.0, %v524
    %v526 = vpop.f32.mrb[0].mxu0
    %527 = vdwg.mxu0
    %v528 = vpack.c.bf16 %v525, %v522
    %v529 = vld [vmem:[#allocation18] sm:$0x1]
    %530 = vmatprep.subr.bf16.mxu0 0
    %531 = vmatpush1.bf16.xpose.msra.mxu0 %v528
    %532 = vmatprep.subr.bf16.mxu0 0
    %533 = vmatpush1.bf16.xpose.msra.mxu0 0
    %534 = vmatprep.subr.bf16.mxu0 0
    %535 = vmatpush1.bf16.xpose.msra.mxu0 0
    %536 = vmatprep.subr.bf16.mxu0 0
    %537 = vmatpush1.bf16.xpose.msra.mxu0 0
    %538 = vmatprep.subr.bf16.mxu0 0
    %539 = vmatpush1.bf16.xpose.msra.mxu0 0
    %540 = vmatprep.subr.bf16.mxu0 0
    %541 = vmatpush1.bf16.xpose.msra.mxu0 0
    %542 = vmatprep.subr.bf16.mxu0 0
    %543 = vmatpush1.bf16.xpose.msra.mxu0 0
    %544 = vmatprep.subr.bf16.mxu0 0
    %545 = vmatpush1.bf16.xpose.msra.mxu0 0
    %546 = vmatprep.subr.bf16.mxu0 0
    %547 = vmatpush1.bf16.xpose.msra.mxu0 0
    %548 = vmatprep.subr.bf16.mxu0 0
    %549 = vmatpush1.bf16.xpose.msra.mxu0 0
    %550 = vmatprep.subr.bf16.mxu0 0
    %551 = vmatpush1.bf16.xpose.msra.mxu0 0
    %552 = vmatprep.subr.bf16.mxu0 0
    %553 = vmatpush1.bf16.xpose.msra.mxu0 0
    %554 = vmatprep.subr.bf16.mxu0 0
    %555 = vmatpush1.bf16.xpose.msra.mxu0 0
    %556 = vmatprep.subr.bf16.mxu0 0
    %557 = vmatpush1.bf16.xpose.msra.mxu0 0
    %558 = vmatprep.subr.bf16.mxu0 0
    %559 = vmatpush1.bf16.xpose.msra.mxu0 0
    %560 = vmatprep.subr.bf16.mxu0 0
    %561 = vmatpush1.bf16.xpose.msra.mxu0 0
    %562 = vmatprep.mubr.bf16.mxu0 0
    %563 = vmatmul.mubr.bf16.gmra.mrb[0].mxu0 %v529
    %v564 = vpop.f32.mrb[0].mxu0
    %v565 = vadd.f32 0.0, %v564
    %v566 = vpop.f32.mrb[0].mxu0
    %v567 = vpop.f32.mrb[0].mxu0
    %v568 = vpop.f32.mrb[0].mxu0
    %569 = vdwg.mxu0
    %vm570 = vcmask 130048
    %v572 = vsel %vm570, %v367, 0
    %v575 = vsel %vm570, %v368, 0
    %v578 = vsel %vm570, %v369, 0
    %580 = vmatprep.subr.bf16.mxu0 0
    %581 = vmatpush1.bf16.msra.mxu0 %v528
    %582 = vmatprep.subr.bf16.mxu0 0
    %583 = vmatpush1.bf16.msra.mxu0 0
    %584 = vmatprep.subr.bf16.mxu0 0
    %585 = vmatpush1.bf16.msra.mxu0 0
    %586 = vmatprep.subr.bf16.mxu0 0
    %587 = vmatpush1.bf16.msra.mxu0 0
    %588 = vmatprep.subr.bf16.mxu0 0
    %589 = vmatpush1.bf16.msra.mxu0 0
    %590 = vmatprep.subr.bf16.mxu0 0
    %591 = vmatpush1.bf16.msra.mxu0 0
    %592 = vmatprep.subr.bf16.mxu0 0
    %593 = vmatpush1.bf16.msra.mxu0 0
    %594 = vmatprep.subr.bf16.mxu0 0
    %595 = vmatpush1.bf16.msra.mxu0 0
    %596 = vmatprep.subr.bf16.mxu0 0
    %597 = vmatpush1.bf16.msra.mxu0 0
    %598 = vmatprep.subr.bf16.mxu0 0
    %599 = vmatpush1.bf16.msra.mxu0 0
    %600 = vmatprep.subr.bf16.mxu0 0
    %601 = vmatpush1.bf16.msra.mxu0 0
    %602 = vmatprep.subr.bf16.mxu0 0
    %603 = vmatpush1.bf16.msra.mxu0 0
    %604 = vmatprep.subr.bf16.mxu0 0
    %605 = vmatpush1.bf16.msra.mxu0 0
    %606 = vmatprep.subr.bf16.mxu0 0
    %607 = vmatpush1.bf16.msra.mxu0 0
    %608 = vmatprep.subr.bf16.mxu0 0
    %609 = vmatpush1.bf16.msra.mxu0 0
    %610 = vmatprep.subr.bf16.mxu0 0
    %611 = vmatpush1.bf16.msra.mxu0 0
    %612 = vmatprep.mubr.bf16.mxu0 0
    %613 = vmatmul.mubr.bf16.gmra.mrb[0].mxu0 %v572
    %v614 = vpop.f32.mrb[0].mxu0
    %v615 = vadd.f32 0.0, %v614
    %v616 = vpop.f32.mrb[0].mxu0
    %v617 = vpop.f32.mrb[0].mxu0
    %v618 = vadd.f32 0.0, %v617
    %v619 = vpop.f32.mrb[0].mxu0
    %620 = vmatprep.mubr.bf16.mxu0 0
    %621 = vmatmul.mubr.bf16.gmra.mrb[0].mxu0 %v575
    %v622 = vpop.f32.mrb[0].mxu0
    %v623 = vadd.f32 0.0, %v622
    %v624 = vpop.f32.mrb[0].mxu0
    %v625 = vpop.f32.mrb[0].mxu0
    %v626 = vadd.f32 0.0, %v625
    %v627 = vpop.f32.mrb[0].mxu0
    %628 = vmatprep.mubr.bf16.mxu0 0
    %629 = vmatmul.mubr.bf16.gmra.mrb[0].mxu0 %v578
    %v630 = vpop.f32.mrb[0].mxu0
    %v631 = vadd.f32 0.0, %v630
    %v632 = vpop.f32.mrb[0].mxu0
    %v633 = vpop.f32.mrb[0].mxu0
    %v634 = vadd.f32 0.0, %v633
    %v635 = vpop.f32.mrb[0].mxu0
    %636 = vdwg.mxu0
    %v637 = vlaneseq
    %v638 = vshrl.u32 %v637, 7
    %v639 = vsub.s32 0, %v638
    %v640 = vrot.slane %v565, %v639
    %v641 = vsel %vm394, %v640, 0.0
    %v642 = vsel %vm395, %v640, 0.0
    %v643 = vsel %vm396, %v640, 0.0
    %v644 = vsel %vm397, %v640, 0.0
    %v645 = vsel %vm398, %v640, 0.0
    %v646 = vsel %vm399, %v640, 0.0
    %v647 = vsel %vm570, %v641, 0.0
    %648 = vadd.xlane.f32.xlu0 %v647
    %v649 = vpop.xlane.xlu0 %648
    %v650 = vsel %vm570, %v642, 0.0
    %651 = vadd.xlane.f32.xlu0 %v650
    %v652 = vpop.xlane.xlu0 %651
    %v653 = vsel %vm570, %v643, 0.0
    %654 = vadd.xlane.f32.xlu0 %v653
    %v655 = vpop.xlane.xlu0 %654
    %v656 = vsel %vm570, %v644, 0.0
    %657 = vadd.xlane.f32.xlu0 %v656
    %v658 = vpop.xlane.xlu0 %657
    %v659 = vsel %vm570, %v645, 0.0
    %660 = vadd.xlane.f32.xlu0 %v659
    %v661 = vpop.xlane.xlu0 %660
    %v662 = vsel %vm570, %v646, 0.0
    %663 = vadd.xlane.f32.xlu0 %v662
    %v664 = vpop.xlane.xlu0 %663
    %v665 = vadd.f32 %v615, %v649
    %v666 = vadd.f32 %v618, %v652
    %v667 = vadd.f32 %v623, %v655
    %v668 = vadd.f32 %v626, %v658
    %v669 = vadd.f32 %v631, %v661
    %v670 = vadd.f32 %v634, %v664
    %v671 = vld [vmem:[#allocation20] sm:$0x1]
    %v673 = vlaneseq
    %v674 = vshrl.u32 %v673, 7
    %v675 = vsub.s32 0, %v674
    %v676 = vrot.slane %v671, %v675
    %v678 = vmul.f32 %v415, %v676
    %v679 = vmul.f32 %v416, %v676
    %v680 = vmul.f32 %v417, %v676
    %v681 = vmul.f32 %v418, %v676
    %v682 = vmul.f32 %v419, %v676
    %v683 = vmul.f32 %v420, %v676
    %684 = vadd.xlane.f32.xlu0 %v678
    %v685 = vpop.xlane.xlu0 %684
    %686 = vadd.xlane.f32.xlu0 %v679
    %v687 = vpop.xlane.xlu0 %686
    %688 = vadd.xlane.f32.xlu0 %v680
    %v689 = vpop.xlane.xlu0 %688
    %690 = vadd.xlane.f32.xlu0 %v681
    %v691 = vpop.xlane.xlu0 %690
    %692 = vadd.xlane.f32.xlu0 %v682
    %v693 = vpop.xlane.xlu0 %692
    %694 = vadd.xlane.f32.xlu0 %v683
    %v695 = vpop.xlane.xlu0 %694
    %v696 = vmul.f32 %v463, %v676
    %v697 = vmul.f32 %v466, %v676
    %698 = vadd.xlane.f32.xlu0 %v696
    %v699 = vpop.xlane.xlu0 %698
    %700 = vadd.xlane.f32.xlu0 %v697
    %v701 = vpop.xlane.xlu0 %700
    %v702 = vmul.f32 %v699, %v472
    %v703 = vmul.f32 %v701, %v474
    %706 = vrot.lane.b32.xlu0 %v702, 127
    %v707 = vpop.permute.xlu0 %706
    %708 = vrot.lane.b32.xlu0 %v703, 127
    %v709 = vpop.permute.xlu0 %708
    %v712 = vadd.f32 %v685, 0.0
    %v713 = vadd.f32 %v687, 0.0
    %v714 = vadd.f32 %v689, 0.0
    %v715 = vadd.f32 %v691, 0.0
    %v716 = vadd.f32 %v693, %v707
    %v717 = vadd.f32 %v695, %v709
    %724 = vrot.lane.b32.xlu0 %v712, 16
    %v725 = vpop.permute.xlu0 %724
    %726 = vrot.lane.b32.xlu0 %v713, 16
    %v727 = vpop.permute.xlu0 %726
    %728 = vrot.lane.b32.xlu0 %v714, 16
    %v729 = vpop.permute.xlu0 %728
    %730 = vrot.lane.b32.xlu0 %v715, 16
    %v731 = vpop.permute.xlu0 %730
    %732 = vrot.lane.b32.xlu0 %v716, 16
    %v733 = vpop.permute.xlu0 %732
    %734 = vrot.lane.b32.xlu0 %v717, 16
    %v735 = vpop.permute.xlu0 %734
    %v742 = vadd.f32 %v665, %v725
    %v743 = vadd.f32 %v666, %v727
    %v744 = vadd.f32 %v667, %v729
    %v745 = vadd.f32 %v668, %v731
    %v746 = vadd.f32 %v669, %v733
    %v747 = vadd.f32 %v670, %v735
    %vm748 = vcmp.gt.f32.partialorder %v742, 0.0
    %vm749 = vcmp.gt.f32.partialorder %v743, 0.0
    %vm750 = vcmp.gt.f32.partialorder %v744, 0.0
    %vm751 = vcmp.gt.f32.partialorder %v745, 0.0
    %vm752 = vcmp.gt.f32.partialorder %v746, 0.0
    %vm753 = vcmp.gt.f32.partialorder %v747, 0.0
    %v754 = vmul.f32 %v742, 0.2
    %v755 = vmul.f32 %v743, 0.2
    %v756 = vmul.f32 %v744, 0.2
    %v757 = vmul.f32 %v745, 0.2
    %v758 = vmul.f32 %v746, 0.2
    %v759 = vmul.f32 %v747, 0.2
    %v760 = vsel %vm748, %v742, %v754
    %v761 = vsel %vm749, %v743, %v755
    %v762 = vsel %vm750, %v744, %v756
    %v763 = vsel %vm751, %v745, %v757
    %v764 = vsel %vm752, %v746, %v758
    %v765 = vsel %vm753, %v747, %v759
    %767 = vset.pattern.permute.xlu0 16
    %768 = vperm.xlu0 %767, %v760
    %v769 = vpop.permute.xlu0 %768
    %772 = vset.pattern.permute.xlu0 16
    %773 = vperm.xlu0 %772, %v761
    %v774 = vpop.permute.xlu0 %773
    %777 = vset.pattern.permute.xlu0 16
    %778 = vperm.xlu0 %777, %v762
    %v779 = vpop.permute.xlu0 %778
    %782 = vset.pattern.permute.xlu0 16
    %783 = vperm.xlu0 %782, %v763
    %v784 = vpop.permute.xlu0 %783
    %787 = vset.pattern.permute.xlu0 16
    %788 = vperm.xlu0 %787, %v764
    %v789 = vpop.permute.xlu0 %788
    %792 = vset.pattern.permute.xlu0 16
    %793 = vperm.xlu0 %792, %v765
    %v794 = vpop.permute.xlu0 %793
    %v796 = vsel %vm394, %v769, -1e+30
    %v797 = vsel %vm395, %v774, -1e+30
    %v798 = vsel %vm396, %v779, -1e+30
    %v799 = vsel %vm397, %v784, -1e+30
    %v800 = vsel %vm398, %v789, -1e+30
    %v801 = vsel %vm399, %v794, -1e+30
    %v802 = vsel %vm570, %v796, -inf
    %v803 = vsel %vm570, %v797, -inf
    %v804 = vsel %vm570, %v798, -inf
    %v805 = vsel %vm570, %v799, -inf
    %v806 = vsel %vm570, %v800, -inf
    %v807 = vmax.f32 %v802, %v806
    %v808 = vsel %vm570, %v801, -inf
    %v809 = vmax.f32 %v803, %v808
    %v810 = vmax.f32 %v807, %v809
    %v811 = vmax.f32 %v804, %v805
    %v812 = vmax.f32 %v810, %v811
    %v813 = vrot.slane %v812, 4
    %v814 = vmax.f32 %v812, %v813
    %v815 = vrot.slane %v814, 2
    %v816 = vmax.f32 %v814, %v815
    %v817 = vrot.slane %v816, 1
    %v818 = vmax.f32 %v816, %v817
    %v819 = vsel %vm394, %v818, -1e+30
    %v820 = vsel %vm395, %v818, -1e+30
    %v821 = vsel %vm396, %v818, -1e+30
    %v822 = vsel %vm397, %v818, -1e+30
    %v823 = vsel %vm398, %v818, -1e+30
    %v824 = vsel %vm399, %v818, -1e+30
    %v825 = vsel %vm570, %v819, -inf
    %826 = vmax.xlane.f32.xlu0 %v825
    %v827 = vpop.xlane.xlu0 %826
    %v828 = vsel %vm570, %v820, -inf
    %829 = vmax.xlane.f32.xlu0 %v828
    %v830 = vpop.xlane.xlu0 %829
    %v831 = vsel %vm570, %v821, -inf
    %832 = vmax.xlane.f32.xlu0 %v831
    %v833 = vpop.xlane.xlu0 %832
    %v834 = vsel %vm570, %v822, -inf
    %835 = vmax.xlane.f32.xlu0 %v834
    %v836 = vpop.xlane.xlu0 %835
    %v837 = vsel %vm570, %v823, -inf
    %838 = vmax.xlane.f32.xlu0 %v837
    %v839 = vpop.xlane.xlu0 %838
    %v840 = vsel %vm570, %v824, -inf
    %841 = vmax.xlane.f32.xlu0 %v840
    %v842 = vpop.xlane.xlu0 %841
    %v843 = vsub.f32 %v760, %v827
    %v844 = vsub.f32 %v761, %v830
    %v845 = vsub.f32 %v762, %v833
    %v846 = vsub.f32 %v763, %v836
    %v847 = vsub.f32 %v764, %v839
    %v848 = vsub.f32 %v765, %v842
    %v849 = vmul.f32 %v843, 1.442695
    %v850 = vpow.pop %v849
    %v851 = vmul.f32 %v844, 1.442695
    %v852 = vpow.pop %v851
    %v853 = vmul.f32 %v845, 1.442695
    %v854 = vpow.pop %v853
    %v855 = vmul.f32 %v846, 1.442695
    %v856 = vpow.pop %v855
    %v857 = vmul.f32 %v847, 1.442695
    %v858 = vpow.pop %v857
    %v859 = vmul.f32 %v848, 1.442695
    %v860 = vpow.pop %v859
    %vm861 = vcmp.eq.s32.totalorder %v324, 16
    %863 = vset.pattern.permute.xlu0 16
    %864 = vperm.xlu0 %863, %v850
    %v865 = vpop.permute.xlu0 %864
    %868 = vset.pattern.permute.xlu0 16
    %869 = vperm.xlu0 %868, %v852
    %v870 = vpop.permute.xlu0 %869
    %873 = vset.pattern.permute.xlu0 16
    %874 = vperm.xlu0 %873, %v854
    %v875 = vpop.permute.xlu0 %874
    %878 = vset.pattern.permute.xlu0 16
    %879 = vperm.xlu0 %878, %v856
    %v880 = vpop.permute.xlu0 %879
    %883 = vset.pattern.permute.xlu0 16
    %884 = vperm.xlu0 %883, %v858
    %v885 = vpop.permute.xlu0 %884
    %888 = vset.pattern.permute.xlu0 16
    %889 = vperm.xlu0 %888, %v860
    %v890 = vpop.permute.xlu0 %889
    %v892 = vmul.f32 %v615, %v865
    %v893 = vmul.f32 %v618, %v870
    %v894 = vmul.f32 %v623, %v875
    %v895 = vmul.f32 %v626, %v880
    %v896 = vmul.f32 %v631, %v885
    %v897 = vmul.f32 %v634, %v890
    %v898 = vsel %vm861, 1, 0
    %vm899 = vcmp.eq.s32.totalorder %v898, 1
    %v900 = vsel %vm899, %v865, %v892
    %v901 = vsel %vm899, %v870, %v893
    %v902 = vsel %vm899, %v875, %v894
    %v903 = vsel %vm899, %v880, %v895
    %v904 = vsel %vm899, %v885, %v896
    %v905 = vsel %vm899, %v890, %v897
    %v906 = vpack.c.bf16 %v901, %v900
    %v907 = vpack.c.bf16 %v903, %v902
    %v908 = vpack.c.bf16 %v905, %v904
    %909 = vmatprep.subr.bf16.mxu0 0
    %910 = vmatpush1.bf16.msra.mxu0 %v906
    %911 = vmatprep.subr.bf16.mxu0 0
    %912 = vmatpush1.bf16.msra.mxu0 %v907
    %913 = vmatprep.subr.bf16.mxu0 0
    %914 = vmatpush1.bf16.msra.mxu0 %v908
    %915 = vmatprep.subr.bf16.mxu0 0
    %916 = vmatpush1.bf16.msra.mxu0 0
    %917 = vmatprep.subr.bf16.mxu0 0
    %918 = vmatpush1.bf16.msra.mxu0 0
    %919 = vmatprep.subr.bf16.mxu0 0
    %920 = vmatpush1.bf16.msra.mxu0 0
    %921 = vmatprep.subr.bf16.mxu0 0
    %922 = vmatpush1.bf16.msra.mxu0 0
    %923 = vmatprep.subr.bf16.mxu0 0
    %924 = vmatpush1.bf16.msra.mxu0 0
    %925 = vmatprep.subr.bf16.mxu0 0
    %926 = vmatpush1.bf16.msra.mxu0 0
    %927 = vmatprep.subr.bf16.mxu0 0
    %928 = vmatpush1.bf16.msra.mxu0 0
    %929 = vmatprep.subr.bf16.mxu0 0
    %930 = vmatpush1.bf16.msra.mxu0 0
    %931 = vmatprep.subr.bf16.mxu0 0
    %932 = vmatpush1.bf16.msra.mxu0 0
    %933 = vmatprep.subr.bf16.mxu0 0
    %934 = vmatpush1.bf16.msra.mxu0 0
    %935 = vmatprep.subr.bf16.mxu0 0
    %936 = vmatpush1.bf16.msra.mxu0 0
    %937 = vmatprep.subr.bf16.mxu0 0
    %938 = vmatpush1.bf16.msra.mxu0 0
    %939 = vmatprep.subr.bf16.mxu0 0
    %940 = vmatpush1.bf16.msra.mxu0 0
    %941 = vmatprep.mubr.bf16.mxu0 0
    %942 = vmatmul.mubr.bf16.gmra.mrb[0].mxu0 %v426
    %v943 = vpop.f32.mrb[0].mxu0
    %v944 = vadd.f32 0.0, %v943
    %v945 = vpop.f32.mrb[0].mxu0
    %v946 = vpop.f32.mrb[0].mxu0
    %v947 = vadd.f32 0.0, %v946
    %v948 = vpop.f32.mrb[0].mxu0
    %949 = vdwg.mxu0
    %v950 = vrcp.pop %v944
    %v951 = vrcp.pop %v947
    %953 = vset.pattern.permute.xlu0 16
    %954 = vperm.xlu0 %953, %v950
    %v955 = vpop.permute.xlu0 %954
    %958 = vset.pattern.permute.xlu0 16
    %959 = vperm.xlu0 %958, %v951
    %v960 = vpop.permute.xlu0 %959
    %v962 = vmul.f32 %v944, %v955
    %v963 = vmul.f32 %v947, %v960
    %vm964 = vcmp.lt.s32.totalorder %v324, 16
    %v965 = vld [vmem:[#allocation21] sm:$0x1]
    %v967 = vlaneseq
    %v968 = vshrl.u32 %v967, 7
    %v969 = vsub.s32 0, %v968
    %v970 = vrot.slane %v965, %v969
    %v972 = vadd.f32 %v962, %v970
    %v973 = vadd.f32 %v963, %v970
    %v974 = vsel %vm964, 1, 0
    %vm975 = vcmp.eq.s32.totalorder %v974, 1
    %v976 = vsel %vm975, %v972, 0.0
    %v977 = vsel %vm975, %v973, 0.0
    %v978 = vmax.f32 %v976, 0.0
    %v979 = vmax.f32 %v977, 0.0
    %v980 = vpack.c.bf16 %v979, %v978
    %v981 = vld [vmem:[#allocation23] sm:$0xf]
    %v982 = vld [vmem:[#allocation23 + $0x4] sm:$0xf]
    %v983 = vld [vmem:[#allocation23 + $0x8] sm:$0xf]
    %v984 = vld [vmem:[#allocation23 + $0xc] sm:$0xf]
    %v985 = vld [vmem:[#allocation23 + $0x10] sm:$0xf]
    %v986 = vld [vmem:[#allocation23 + $0x14] sm:$0xf]
    %v987 = vld [vmem:[#allocation23 + $0x18] sm:$0xf]
    %v988 = vld [vmem:[#allocation23 + $0x1c] sm:$0xf]
    %v989 = vld [vmem:[#allocation23 + $0x20] sm:$0xf]
    %v990 = vld [vmem:[#allocation23 + $0x24] sm:$0xf]
    %v991 = vld [vmem:[#allocation23 + $0x28] sm:$0xf]
    %v992 = vld [vmem:[#allocation23 + $0x2c] sm:$0xf]
    %v993 = vld [vmem:[#allocation23 + $0x30] sm:$0xf]
    %v994 = vld [vmem:[#allocation23 + $0x34] sm:$0xf]
    %v995 = vld [vmem:[#allocation23 + $0x38] sm:$0xf]
    %v996 = vld [vmem:[#allocation23 + $0x3c] sm:$0xf]
    %v1013 = vunpack.c.l.b16 %v981
    %v1014 = vunpack.c.l.b16 %v982
    %v1015 = vunpack.c.l.b16 %v983
    %v1016 = vunpack.c.l.b16 %v984
    %v1017 = vunpack.c.l.b16 %v985
    %v1018 = vunpack.c.l.b16 %v986
    %v1019 = vunpack.c.l.b16 %v987
    %v1020 = vunpack.c.l.b16 %v988
    %v1021 = vunpack.c.l.b16 %v989
    %v1022 = vunpack.c.l.b16 %v990
    %v1023 = vunpack.c.l.b16 %v991
    %v1024 = vunpack.c.l.b16 %v992
    %v1025 = vunpack.c.l.b16 %v993
    %v1026 = vunpack.c.l.b16 %v994
    %v1027 = vunpack.c.l.b16 %v995
    %v1028 = vunpack.c.l.b16 %v996
    %v1029 = vpack.c.b16 %v1014, %v1013
    %v1030 = vpack.c.b16 %v1016, %v1015
    %v1031 = vpack.c.b16 %v1018, %v1017
    %v1032 = vpack.c.b16 %v1020, %v1019
    %v1033 = vpack.c.b16 %v1022, %v1021
    %v1034 = vpack.c.b16 %v1024, %v1023
    %v1035 = vpack.c.b16 %v1026, %v1025
    %v1036 = vpack.c.b16 %v1028, %v1027
    %1045 = vmatprep.subr.bf16.mxu0 0
    %1046 = vmatpush1.bf16.msra.mxu0 %v1029
    %1047 = vmatprep.subr.bf16.mxu0 0
    %1048 = vmatpush1.bf16.msra.mxu0 %v1030
    %1049 = vmatprep.subr.bf16.mxu0 0
    %1050 = vmatpush1.bf16.msra.mxu0 %v1031
    %1051 = vmatprep.subr.bf16.mxu0 0
    %1052 = vmatpush1.bf16.msra.mxu0 %v1032
    %1053 = vmatprep.subr.bf16.mxu0 0
    %1054 = vmatpush1.bf16.msra.mxu0 %v1033
    %1055 = vmatprep.subr.bf16.mxu0 0
    %1056 = vmatpush1.bf16.msra.mxu0 %v1034
    %1057 = vmatprep.subr.bf16.mxu0 0
    %1058 = vmatpush1.bf16.msra.mxu0 %v1035
    %1059 = vmatprep.subr.bf16.mxu0 0
    %1060 = vmatpush1.bf16.msra.mxu0 %v1036
    %1061 = vmatprep.subr.bf16.mxu0 0
    %1062 = vmatpush1.bf16.msra.mxu0 0
    %1063 = vmatprep.subr.bf16.mxu0 0
    %1064 = vmatpush1.bf16.msra.mxu0 0
    %1065 = vmatprep.subr.bf16.mxu0 0
    %1066 = vmatpush1.bf16.msra.mxu0 0
    %1067 = vmatprep.subr.bf16.mxu0 0
    %1068 = vmatpush1.bf16.msra.mxu0 0
    %1069 = vmatprep.subr.bf16.mxu0 0
    %1070 = vmatpush1.bf16.msra.mxu0 0
    %1071 = vmatprep.subr.bf16.mxu0 0
    %1072 = vmatpush1.bf16.msra.mxu0 0
    %1073 = vmatprep.subr.bf16.mxu0 0
    %1074 = vmatpush1.bf16.msra.mxu0 0
    %1075 = vmatprep.subr.bf16.mxu0 0
    %1076 = vmatpush1.bf16.msra.mxu0 0
    %1077 = vmatprep.mubr.bf16.mxu0 0
    %1078 = vmatmul.mubr.bf16.gmra.mrb[0].mxu0 %v980
    %v1079 = vpop.f32.mrb[0].mxu0
    %v1080 = vadd.f32 0.0, %v1079
    %v1081 = vpop.f32.mrb[0].mxu0
    %v1082 = vpop.f32.mrb[0].mxu0
    %v1083 = vadd.f32 0.0, %v1082
    %v1084 = vpop.f32.mrb[0].mxu0
    %1085 = vdwg.mxu0
    %v1086 = vpack.c.bf16 %v1083, %v1080
    %v1087 = vld [vmem:[#allocation24] sm:$0x1]
    %1088 = vmatprep.subr.bf16.mxu0 0
    %1089 = vmatpush1.bf16.xpose.msra.mxu0 %v1086
    %1090 = vmatprep.subr.bf16.mxu0 0
    %1091 = vmatpush1.bf16.xpose.msra.mxu0 0
    %1092 = vmatprep.subr.bf16.mxu0 0
    %1093 = vmatpush1.bf16.xpose.msra.mxu0 0
    %1094 = vmatprep.subr.bf16.mxu0 0
    %1095 = vmatpush1.bf16.xpose.msra.mxu0 0
    %1096 = vmatprep.subr.bf16.mxu0 0
    %1097 = vmatpush1.bf16.xpose.msra.mxu0 0
    %1098 = vmatprep.subr.bf16.mxu0 0
    %1099 = vmatpush1.bf16.xpose.msra.mxu0 0
    %1100 = vmatprep.subr.bf16.mxu0 0
    %1101 = vmatpush1.bf16.xpose.msra.mxu0 0
    %1102 = vmatprep.subr.bf16.mxu0 0
    %1103 = vmatpush1.bf16.xpose.msra.mxu0 0
    %1104 = vmatprep.subr.bf16.mxu0 0
    %1105 = vmatpush1.bf16.xpose.msra.mxu0 0
    %1106 = vmatprep.subr.bf16.mxu0 0
    %1107 = vmatpush1.bf16.xpose.msra.mxu0 0
    %1108 = vmatprep.subr.bf16.mxu0 0
    %1109 = vmatpush1.bf16.xpose.msra.mxu0 0
    %1110 = vmatprep.subr.bf16.mxu0 0
    %1111 = vmatpush1.bf16.xpose.msra.mxu0 0
    %1112 = vmatprep.subr.bf16.mxu0 0
    %1113 = vmatpush1.bf16.xpose.msra.mxu0 0
    %1114 = vmatprep.subr.bf16.mxu0 0
    %1115 = vmatpush1.bf16.xpose.msra.mxu0 0
    %1116 = vmatprep.subr.bf16.mxu0 0
    %1117 = vmatpush1.bf16.xpose.msra.mxu0 0
    %1118 = vmatprep.subr.bf16.mxu0 0
    %1119 = vmatpush1.bf16.xpose.msra.mxu0 0
    %1120 = vmatprep.mubr.bf16.mxu0 0
    %1121 = vmatmul.mubr.bf16.gmra.mrb[0].mxu0 %v1087
    %v1122 = vpop.f32.mrb[0].mxu0
    %v1123 = vadd.f32 0.0, %v1122
    %v1124 = vpop.f32.mrb[0].mxu0
    %v1125 = vpop.f32.mrb[0].mxu0
    %v1126 = vpop.f32.mrb[0].mxu0
    %1127 = vdwg.mxu0
    %1128 = vmatprep.subr.bf16.mxu0 0
    %1129 = vmatpush1.bf16.msra.mxu0 %v1086
    %1130 = vmatprep.subr.bf16.mxu0 0
    %1131 = vmatpush1.bf16.msra.mxu0 0
    %1132 = vmatprep.subr.bf16.mxu0 0
    %1133 = vmatpush1.bf16.msra.mxu0 0
    %1134 = vmatprep.subr.bf16.mxu0 0
    %1135 = vmatpush1.bf16.msra.mxu0 0
    %1136 = vmatprep.subr.bf16.mxu0 0
    %1137 = vmatpush1.bf16.msra.mxu0 0
    %1138 = vmatprep.subr.bf16.mxu0 0
    %1139 = vmatpush1.bf16.msra.mxu0 0
    %1140 = vmatprep.subr.bf16.mxu0 0
    %1141 = vmatpush1.bf16.msra.mxu0 0
    %1142 = vmatprep.subr.bf16.mxu0 0
    %1143 = vmatpush1.bf16.msra.mxu0 0
    %1144 = vmatprep.subr.bf16.mxu0 0
    %1145 = vmatpush1.bf16.msra.mxu0 0
    %1146 = vmatprep.subr.bf16.mxu0 0
    %1147 = vmatpush1.bf16.msra.mxu0 0
    %1148 = vmatprep.subr.bf16.mxu0 0
    %1149 = vmatpush1.bf16.msra.mxu0 0
    %1150 = vmatprep.subr.bf16.mxu0 0
    %1151 = vmatpush1.bf16.msra.mxu0 0
    %1152 = vmatprep.subr.bf16.mxu0 0
    %1153 = vmatpush1.bf16.msra.mxu0 0
    %1154 = vmatprep.subr.bf16.mxu0 0
    %1155 = vmatpush1.bf16.msra.mxu0 0
    %1156 = vmatprep.subr.bf16.mxu0 0
    %1157 = vmatpush1.bf16.msra.mxu0 0
    %1158 = vmatprep.subr.bf16.mxu0 0
    %1159 = vmatpush1.bf16.msra.mxu0 0
    %1160 = vmatprep.mubr.bf16.mxu0 0
    %1161 = vmatmul.mubr.bf16.gmra.mrb[0].mxu0 %v572
    %v1162 = vpop.f32.mrb[0].mxu0
    %v1163 = vadd.f32 0.0, %v1162
    %v1164 = vpop.f32.mrb[0].mxu0
    %v1165 = vpop.f32.mrb[0].mxu0
    %v1166 = vadd.f32 0.0, %v1165
    %v1167 = vpop.f32.mrb[0].mxu0
    %1168 = vmatprep.mubr.bf16.mxu0 0
    %1169 = vmatmul.mubr.bf16.gmra.mrb[0].mxu0 %v575
    %v1170 = vpop.f32.mrb[0].mxu0
    %v1171 = vadd.f32 0.0, %v1170
    %v1172 = vpop.f32.mrb[0].mxu0
    %v1173 = vpop.f32.mrb[0].mxu0
    %v1174 = vadd.f32 0.0, %v1173
    %v1175 = vpop.f32.mrb[0].mxu0
    %1176 = vmatprep.mubr.bf16.mxu0 0
    %1177 = vmatmul.mubr.bf16.gmra.mrb[0].mxu0 %v578
    %v1178 = vpop.f32.mrb[0].mxu0
    %v1179 = vadd.f32 0.0, %v1178
    %v1180 = vpop.f32.mrb[0].mxu0
    %v1181 = vpop.f32.mrb[0].mxu0
    %v1182 = vadd.f32 0.0, %v1181
    %v1183 = vpop.f32.mrb[0].mxu0
    %1184 = vdwg.mxu0
    %v1185 = vlaneseq
    %v1186 = vshrl.u32 %v1185, 7
    %v1187 = vsub.s32 0, %v1186
    %v1188 = vrot.slane %v1123, %v1187
    %v1189 = vsel %vm394, %v1188, 0.0
    %v1190 = vsel %vm395, %v1188, 0.0
    %v1191 = vsel %vm396, %v1188, 0.0
    %v1192 = vsel %vm397, %v1188, 0.0
    %v1193 = vsel %vm398, %v1188, 0.0
    %v1194 = vsel %vm399, %v1188, 0.0
    %v1195 = vsel %vm570, %v1189, 0.0
    %1196 = vadd.xlane.f32.xlu0 %v1195
    %v1197 = vpop.xlane.xlu0 %1196
    %v1198 = vsel %vm570, %v1190, 0.0
    %1199 = vadd.xlane.f32.xlu0 %v1198
    %v1200 = vpop.xlane.xlu0 %1199
    %v1201 = vsel %vm570, %v1191, 0.0
    %1202 = vadd.xlane.f32.xlu0 %v1201
    %v1203 = vpop.xlane.xlu0 %1202
    %v1204 = vsel %vm570, %v1192, 0.0
    %1205 = vadd.xlane.f32.xlu0 %v1204
    %v1206 = vpop.xlane.xlu0 %1205
    %v1207 = vsel %vm570, %v1193, 0.0
    %1208 = vadd.xlane.f32.xlu0 %v1207
    %v1209 = vpop.xlane.xlu0 %1208
    %v1210 = vsel %vm570, %v1194, 0.0
    %1211 = vadd.xlane.f32.xlu0 %v1210
    %v1212 = vpop.xlane.xlu0 %1211
    %v1213 = vadd.f32 %v1163, %v1197
    %v1214 = vadd.f32 %v1166, %v1200
    %v1215 = vadd.f32 %v1171, %v1203
    %v1216 = vadd.f32 %v1174, %v1206
    %v1217 = vadd.f32 %v1179, %v1209
    %v1218 = vadd.f32 %v1182, %v1212
    %v1219 = vld [vmem:[#allocation26] sm:$0x1]
    %v1221 = vlaneseq
    %v1222 = vshrl.u32 %v1221, 7
    %v1223 = vsub.s32 0, %v1222
    %v1224 = vrot.slane %v1219, %v1223
    %v1226 = vmul.f32 %v415, %v1224
    %v1227 = vmul.f32 %v416, %v1224
    %v1228 = vmul.f32 %v417, %v1224
    %v1229 = vmul.f32 %v418, %v1224
    %v1230 = vmul.f32 %v419, %v1224
    %v1231 = vmul.f32 %v420, %v1224
    %1232 = vadd.xlane.f32.xlu0 %v1226
    %v1233 = vpop.xlane.xlu0 %1232
    %1234 = vadd.xlane.f32.xlu0 %v1227
    %v1235 = vpop.xlane.xlu0 %1234
    %1236 = vadd.xlane.f32.xlu0 %v1228
    %v1237 = vpop.xlane.xlu0 %1236
    %1238 = vadd.xlane.f32.xlu0 %v1229
    %v1239 = vpop.xlane.xlu0 %1238
    %1240 = vadd.xlane.f32.xlu0 %v1230
    %v1241 = vpop.xlane.xlu0 %1240
    %1242 = vadd.xlane.f32.xlu0 %v1231
    %v1243 = vpop.xlane.xlu0 %1242
    %v1244 = vmul.f32 %v463, %v1224
    %v1245 = vmul.f32 %v466, %v1224
    %1246 = vadd.xlane.f32.xlu0 %v1244
    %v1247 = vpop.xlane.xlu0 %1246
    %1248 = vadd.xlane.f32.xlu0 %v1245
    %v1249 = vpop.xlane.xlu0 %1248
    %v1250 = vmul.f32 %v1247, %v472
    %v1251 = vmul.f32 %v1249, %v474
    %1254 = vrot.lane.b32.xlu0 %v1250, 127
    %v1255 = vpop.permute.xlu0 %1254
    %1256 = vrot.lane.b32.xlu0 %v1251, 127
    %v1257 = vpop.permute.xlu0 %1256
    %v1260 = vadd.f32 %v1233, 0.0
    %v1261 = vadd.f32 %v1235, 0.0
    %v1262 = vadd.f32 %v1237, 0.0
    %v1263 = vadd.f32 %v1239, 0.0
    %v1264 = vadd.f32 %v1241, %v1255
    %v1265 = vadd.f32 %v1243, %v1257
    %1272 = vrot.lane.b32.xlu0 %v1260, 32
    %v1273 = vpop.permute.xlu0 %1272
    %1274 = vrot.lane.b32.xlu0 %v1261, 32
    %v1275 = vpop.permute.xlu0 %1274
    %1276 = vrot.lane.b32.xlu0 %v1262, 32
    %v1277 = vpop.permute.xlu0 %1276
    %1278 = vrot.lane.b32.xlu0 %v1263, 32
    %v1279 = vpop.permute.xlu0 %1278
    %1280 = vrot.lane.b32.xlu0 %v1264, 32
    %v1281 = vpop.permute.xlu0 %1280
    %1282 = vrot.lane.b32.xlu0 %v1265, 32
    %v1283 = vpop.permute.xlu0 %1282
    %v1290 = vadd.f32 %v1213, %v1273
    %v1291 = vadd.f32 %v1214, %v1275
    %v1292 = vadd.f32 %v1215, %v1277
    %v1293 = vadd.f32 %v1216, %v1279
    %v1294 = vadd.f32 %v1217, %v1281
    %v1295 = vadd.f32 %v1218, %v1283
    %vm1296 = vcmp.gt.f32.partialorder %v1290, 0.0
    %vm1297 = vcmp.gt.f32.partialorder %v1291, 0.0
    %vm1298 = vcmp.gt.f32.partialorder %v1292, 0.0
    %vm1299 = vcmp.gt.f32.partialorder %v1293, 0.0
    %vm1300 = vcmp.gt.f32.partialorder %v1294, 0.0
    %vm1301 = vcmp.gt.f32.partialorder %v1295, 0.0
    %v1302 = vmul.f32 %v1290, 0.2
    %v1303 = vmul.f32 %v1291, 0.2
    %v1304 = vmul.f32 %v1292, 0.2
    %v1305 = vmul.f32 %v1293, 0.2
    %v1306 = vmul.f32 %v1294, 0.2
    %v1307 = vmul.f32 %v1295, 0.2
    %v1308 = vsel %vm1296, %v1290, %v1302
    %v1309 = vsel %vm1297, %v1291, %v1303
    %v1310 = vsel %vm1298, %v1292, %v1304
    %v1311 = vsel %vm1299, %v1293, %v1305
    %v1312 = vsel %vm1300, %v1294, %v1306
    %v1313 = vsel %vm1301, %v1295, %v1307
    %1315 = vset.pattern.permute.xlu0 32
    %1316 = vperm.xlu0 %1315, %v1308
    %v1317 = vpop.permute.xlu0 %1316
    %1320 = vset.pattern.permute.xlu0 32
    %1321 = vperm.xlu0 %1320, %v1309
    %v1322 = vpop.permute.xlu0 %1321
    %1325 = vset.pattern.permute.xlu0 32
    %1326 = vperm.xlu0 %1325, %v1310
    %v1327 = vpop.permute.xlu0 %1326
    %1330 = vset.pattern.permute.xlu0 32
    %1331 = vperm.xlu0 %1330, %v1311
    %v1332 = vpop.permute.xlu0 %1331
    %1335 = vset.pattern.permute.xlu0 32
    %1336 = vperm.xlu0 %1335, %v1312
    %v1337 = vpop.permute.xlu0 %1336
    %1340 = vset.pattern.permute.xlu0 32
    %1341 = vperm.xlu0 %1340, %v1313
    %v1342 = vpop.permute.xlu0 %1341
    %v1344 = vsel %vm394, %v1317, -1e+30
    %v1345 = vsel %vm395, %v1322, -1e+30
    %v1346 = vsel %vm396, %v1327, -1e+30
    %v1347 = vsel %vm397, %v1332, -1e+30
    %v1348 = vsel %vm398, %v1337, -1e+30
    %v1349 = vsel %vm399, %v1342, -1e+30
    %v1350 = vsel %vm570, %v1344, -inf
    %v1351 = vsel %vm570, %v1345, -inf
    %v1352 = vsel %vm570, %v1346, -inf
    %v1353 = vsel %vm570, %v1347, -inf
    %v1354 = vsel %vm570, %v1348, -inf
    %v1355 = vmax.f32 %v1350, %v1354
    %v1356 = vsel %vm570, %v1349, -inf
    %v1357 = vmax.f32 %v1351, %v1356
    %v1358 = vmax.f32 %v1355, %v1357
    %v1359 = vmax.f32 %v1352, %v1353
    %v1360 = vmax.f32 %v1358, %v1359
    %v1361 = vrot.slane %v1360, 4
    %v1362 = vmax.f32 %v1360, %v1361
    %v1363 = vrot.slane %v1362, 2
    %v1364 = vmax.f32 %v1362, %v1363
    %v1365 = vrot.slane %v1364, 1
    %v1366 = vmax.f32 %v1364, %v1365
    %v1367 = vsel %vm394, %v1366, -1e+30
    %v1368 = vsel %vm395, %v1366, -1e+30
    %v1369 = vsel %vm396, %v1366, -1e+30
    %v1370 = vsel %vm397, %v1366, -1e+30
    %v1371 = vsel %vm398, %v1366, -1e+30
    %v1372 = vsel %vm399, %v1366, -1e+30
    %v1373 = vsel %vm570, %v1367, -inf
    %1374 = vmax.xlane.f32.xlu0 %v1373
    %v1375 = vpop.xlane.xlu0 %1374
    %v1376 = vsel %vm570, %v1368, -inf
    %1377 = vmax.xlane.f32.xlu0 %v1376
    %v1378 = vpop.xlane.xlu0 %1377
    %v1379 = vsel %vm570, %v1369, -inf
    %1380 = vmax.xlane.f32.xlu0 %v1379
    %v1381 = vpop.xlane.xlu0 %1380
    %v1382 = vsel %vm570, %v1370, -inf
    %1383 = vmax.xlane.f32.xlu0 %v1382
    %v1384 = vpop.xlane.xlu0 %1383
    %v1385 = vsel %vm570, %v1371, -inf
    %1386 = vmax.xlane.f32.xlu0 %v1385
    %v1387 = vpop.xlane.xlu0 %1386
    %v1388 = vsel %vm570, %v1372, -inf
    %1389 = vmax.xlane.f32.xlu0 %v1388
    %v1390 = vpop.xlane.xlu0 %1389
    %v1391 = vsub.f32 %v1308, %v1375
    %v1392 = vsub.f32 %v1309, %v1378
    %v1393 = vsub.f32 %v1310, %v1381
    %v1394 = vsub.f32 %v1311, %v1384
    %v1395 = vsub.f32 %v1312, %v1387
    %v1396 = vsub.f32 %v1313, %v1390
    %v1397 = vmul.f32 %v1391, 1.442695
    %v1398 = vpow.pop %v1397
    %v1399 = vmul.f32 %v1392, 1.442695
    %v1400 = vpow.pop %v1399
    %v1401 = vmul.f32 %v1393, 1.442695
    %v1402 = vpow.pop %v1401
    %v1403 = vmul.f32 %v1394, 1.442695
    %v1404 = vpow.pop %v1403
    %v1405 = vmul.f32 %v1395, 1.442695
    %v1406 = vpow.pop %v1405
    %v1407 = vmul.f32 %v1396, 1.442695
    %v1408 = vpow.pop %v1407
    %vm1409 = vcmp.eq.s32.totalorder %v324, 32
    %1411 = vset.pattern.permute.xlu0 32
    %1412 = vperm.xlu0 %1411, %v1398
    %v1413 = vpop.permute.xlu0 %1412
    %1416 = vset.pattern.permute.xlu0 32
    %1417 = vperm.xlu0 %1416, %v1400
    %v1418 = vpop.permute.xlu0 %1417
    %1421 = vset.pattern.permute.xlu0 32
    %1422 = vperm.xlu0 %1421, %v1402
    %v1423 = vpop.permute.xlu0 %1422
    %1426 = vset.pattern.permute.xlu0 32
    %1427 = vperm.xlu0 %1426, %v1404
    %v1428 = vpop.permute.xlu0 %1427
    %1431 = vset.pattern.permute.xlu0 32
    %1432 = vperm.xlu0 %1431, %v1406
    %v1433 = vpop.permute.xlu0 %1432
    %1436 = vset.pattern.permute.xlu0 32
    %1437 = vperm.xlu0 %1436, %v1408
    %v1438 = vpop.permute.xlu0 %1437
    %v1440 = vmul.f32 %v1163, %v1413
    %v1441 = vmul.f32 %v1166, %v1418
    %v1442 = vmul.f32 %v1171, %v1423
    %v1443 = vmul.f32 %v1174, %v1428
    %v1444 = vmul.f32 %v1179, %v1433
    %v1445 = vmul.f32 %v1182, %v1438
    %v1446 = vsel %vm1409, 1, 0
    %vm1447 = vcmp.eq.s32.totalorder %v1446, 1
    %v1448 = vsel %vm1447, %v1413, %v1440
    %v1449 = vsel %vm1447, %v1418, %v1441
    %v1450 = vsel %vm1447, %v1423, %v1442
    %v1451 = vsel %vm1447, %v1428, %v1443
    %v1452 = vsel %vm1447, %v1433, %v1444
    %v1453 = vsel %vm1447, %v1438, %v1445
    %v1454 = vpack.c.bf16 %v1449, %v1448
    %v1455 = vpack.c.bf16 %v1451, %v1450
    %v1456 = vpack.c.bf16 %v1453, %v1452
    %1457 = vmatprep.subr.bf16.mxu0 0
    %1458 = vmatpush1.bf16.msra.mxu0 %v1454
    %1459 = vmatprep.subr.bf16.mxu0 0
    %1460 = vmatpush1.bf16.msra.mxu0 %v1455
    %1461 = vmatprep.subr.bf16.mxu0 0
    %1462 = vmatpush1.bf16.msra.mxu0 %v1456
    %1463 = vmatprep.subr.bf16.mxu0 0
    %1464 = vmatpush1.bf16.msra.mxu0 0
    %1465 = vmatprep.subr.bf16.mxu0 0
    %1466 = vmatpush1.bf16.msra.mxu0 0
    %1467 = vmatprep.subr.bf16.mxu0 0
    %1468 = vmatpush1.bf16.msra.mxu0 0
    %1469 = vmatprep.subr.bf16.mxu0 0
    %1470 = vmatpush1.bf16.msra.mxu0 0
    %1471 = vmatprep.subr.bf16.mxu0 0
    %1472 = vmatpush1.bf16.msra.mxu0 0
    %1473 = vmatprep.subr.bf16.mxu0 0
    %1474 = vmatpush1.bf16.msra.mxu0 0
    %1475 = vmatprep.subr.bf16.mxu0 0
    %1476 = vmatpush1.bf16.msra.mxu0 0
    %1477 = vmatprep.subr.bf16.mxu0 0
    %1478 = vmatpush1.bf16.msra.mxu0 0
    %1479 = vmatprep.subr.bf16.mxu0 0
    %1480 = vmatpush1.bf16.msra.mxu0 0
    %1481 = vmatprep.subr.bf16.mxu0 0
    %1482 = vmatpush1.bf16.msra.mxu0 0
    %1483 = vmatprep.subr.bf16.mxu0 0
    %1484 = vmatpush1.bf16.msra.mxu0 0
    %1485 = vmatprep.subr.bf16.mxu0 0
    %1486 = vmatpush1.bf16.msra.mxu0 0
    %1487 = vmatprep.subr.bf16.mxu0 0
    %1488 = vmatpush1.bf16.msra.mxu0 0
    %1489 = vmatprep.mubr.bf16.mxu0 0
    %1490 = vmatmul.mubr.bf16.gmra.mrb[0].mxu0 %v426
    %v1491 = vpop.f32.mrb[0].mxu0
    %v1492 = vadd.f32 0.0, %v1491
    %v1493 = vpop.f32.mrb[0].mxu0
    %v1494 = vpop.f32.mrb[0].mxu0
    %v1495 = vadd.f32 0.0, %v1494
    %v1496 = vpop.f32.mrb[0].mxu0
    %1497 = vdwg.mxu0
    %v1498 = vrcp.pop %v1492
    %v1499 = vrcp.pop %v1495
    %1501 = vset.pattern.permute.xlu0 32
    %1502 = vperm.xlu0 %1501, %v1498
    %v1503 = vpop.permute.xlu0 %1502
    %1506 = vset.pattern.permute.xlu0 32
    %1507 = vperm.xlu0 %1506, %v1499
    %v1508 = vpop.permute.xlu0 %1507
    %v1510 = vmul.f32 %v1492, %v1503
    %v1511 = vmul.f32 %v1495, %v1508
    %vm1512 = vcmp.lt.s32.totalorder %v324, 32
    %v1513 = vld [vmem:[#allocation27] sm:$0x1]
    %v1515 = vlaneseq
    %v1516 = vshrl.u32 %v1515, 7
    %v1517 = vsub.s32 0, %v1516
    %v1518 = vrot.slane %v1513, %v1517
    %v1520 = vadd.f32 %v1510, %v1518
    %v1521 = vadd.f32 %v1511, %v1518
    %v1522 = vsel %vm1512, 1, 0
    %vm1523 = vcmp.eq.s32.totalorder %v1522, 1
    %v1524 = vsel %vm1523, %v1520, 0.0
    %v1525 = vsel %vm1523, %v1521, 0.0
    %v1526 = vmax.f32 %v1524, 0.0
    %v1527 = vmax.f32 %v1525, 0.0
    %v1528 = vpack.c.bf16 %v1527, %v1526
    %v1529 = vld [vmem:[#allocation29] sm:$0xff]
    %v1530 = vld [vmem:[#allocation29 + $0x8] sm:$0xff]
    %v1531 = vld [vmem:[#allocation29 + $0x10] sm:$0xff]
    %v1532 = vld [vmem:[#allocation29 + $0x18] sm:$0xff]
    %v1533 = vld [vmem:[#allocation29 + $0x20] sm:$0xff]
    %v1534 = vld [vmem:[#allocation29 + $0x28] sm:$0xff]
    %v1535 = vld [vmem:[#allocation29 + $0x30] sm:$0xff]
    %v1536 = vld [vmem:[#allocation29 + $0x38] sm:$0xff]
    %v1537 = vld [vmem:[#allocation29 + $0x40] sm:$0xff]
    %v1538 = vld [vmem:[#allocation29 + $0x48] sm:$0xff]
    %v1539 = vld [vmem:[#allocation29 + $0x50] sm:$0xff]
    %v1540 = vld [vmem:[#allocation29 + $0x58] sm:$0xff]
    %v1541 = vld [vmem:[#allocation29 + $0x60] sm:$0xff]
    %v1542 = vld [vmem:[#allocation29 + $0x68] sm:$0xff]
    %v1543 = vld [vmem:[#allocation29 + $0x70] sm:$0xff]
    %v1544 = vld [vmem:[#allocation29 + $0x78] sm:$0xff]
    %v1561 = vunpack.c.l.b16 %v1529
    %v1562 = vunpack.c.h.b16 %v1529
    %v1563 = vunpack.c.l.b16 %v1530
    %v1564 = vunpack.c.h.b16 %v1530
    %v1565 = vunpack.c.l.b16 %v1531
    %v1566 = vunpack.c.h.b16 %v1531
    %v1567 = vunpack.c.l.b16 %v1532
    %v1568 = vunpack.c.h.b16 %v1532
    %v1569 = vunpack.c.l.b16 %v1533
    %v1570 = vunpack.c.h.b16 %v1533
    %v1571 = vunpack.c.l.b16 %v1534
    %v1572 = vunpack.c.h.b16 %v1534
    %v1573 = vunpack.c.l.b16 %v1535
    %v1574 = vunpack.c.h.b16 %v1535
    %v1575 = vunpack.c.l.b16 %v1536
    %v1576 = vunpack.c.h.b16 %v1536
    %v1577 = vunpack.c.l.b16 %v1537
    %v1578 = vunpack.c.h.b16 %v1537
    %v1579 = vunpack.c.l.b16 %v1538
    %v1580 = vunpack.c.h.b16 %v1538
    %v1581 = vunpack.c.l.b16 %v1539
    %v1582 = vunpack.c.h.b16 %v1539
    %v1583 = vunpack.c.l.b16 %v1540
    %v1584 = vunpack.c.h.b16 %v1540
    %v1585 = vunpack.c.l.b16 %v1541
    %v1586 = vunpack.c.h.b16 %v1541
    %v1587 = vunpack.c.l.b16 %v1542
    %v1588 = vunpack.c.h.b16 %v1542
    %v1589 = vunpack.c.l.b16 %v1543
    %v1590 = vunpack.c.h.b16 %v1543
    %v1591 = vunpack.c.l.b16 %v1544
    %v1592 = vunpack.c.h.b16 %v1544
    %v1593 = vpack.c.b16 %v1563, %v1561
    %v1594 = vpack.c.b16 %v1564, %v1562
    %v1595 = vpack.c.b16 %v1567, %v1565
    %v1596 = vpack.c.b16 %v1568, %v1566
    %v1597 = vpack.c.b16 %v1571, %v1569
    %v1598 = vpack.c.b16 %v1572, %v1570
    %v1599 = vpack.c.b16 %v1575, %v1573
    %v1600 = vpack.c.b16 %v1576, %v1574
    %v1601 = vpack.c.b16 %v1579, %v1577
    %v1602 = vpack.c.b16 %v1580, %v1578
    %v1603 = vpack.c.b16 %v1583, %v1581
    %v1604 = vpack.c.b16 %v1584, %v1582
    %v1605 = vpack.c.b16 %v1587, %v1585
    %v1606 = vpack.c.b16 %v1588, %v1586
    %v1607 = vpack.c.b16 %v1591, %v1589
    %v1608 = vpack.c.b16 %v1592, %v1590
    %1625 = vmatprep.subr.bf16.mxu0 %v1594
    %1626 = vmatpush1.bf16.msra.mxu0 %v1593
    %1627 = vmatprep.subr.bf16.mxu0 %v1596
    %1628 = vmatpush1.bf16.msra.mxu0 %v1595
    %1629 = vmatprep.subr.bf16.mxu0 %v1598
    %1630 = vmatpush1.bf16.msra.mxu0 %v1597
    %1631 = vmatprep.subr.bf16.mxu0 %v1600
    %1632 = vmatpush1.bf16.msra.mxu0 %v1599
    %1633 = vmatprep.subr.bf16.mxu0 %v1602
    %1634 = vmatpush1.bf16.msra.mxu0 %v1601
    %1635 = vmatprep.subr.bf16.mxu0 %v1604
    %1636 = vmatpush1.bf16.msra.mxu0 %v1603
    %1637 = vmatprep.subr.bf16.mxu0 %v1606
    %1638 = vmatpush1.bf16.msra.mxu0 %v1605
    %1639 = vmatprep.subr.bf16.mxu0 %v1608
    %1640 = vmatpush1.bf16.msra.mxu0 %v1607
    %1641 = vmatprep.subr.bf16.mxu0 0
    %1642 = vmatpush1.bf16.msra.mxu0 0
    %1643 = vmatprep.subr.bf16.mxu0 0
    %1644 = vmatpush1.bf16.msra.mxu0 0
    %1645 = vmatprep.subr.bf16.mxu0 0
    %1646 = vmatpush1.bf16.msra.mxu0 0
    %1647 = vmatprep.subr.bf16.mxu0 0
    %1648 = vmatpush1.bf16.msra.mxu0 0
    %1649 = vmatprep.subr.bf16.mxu0 0
    %1650 = vmatpush1.bf16.msra.mxu0 0
    %1651 = vmatprep.subr.bf16.mxu0 0
    %1652 = vmatpush1.bf16.msra.mxu0 0
    %1653 = vmatprep.subr.bf16.mxu0 0
    %1654 = vmatpush1.bf16.msra.mxu0 0
    %1655 = vmatprep.subr.bf16.mxu0 0
    %1656 = vmatpush1.bf16.msra.mxu0 0
    %1657 = vmatprep.mubr.bf16.mxu0 0
    %1658 = vmatmul.mubr.bf16.gmra.mrb[0].mxu0 %v1528
    %v1659 = vpop.f32.mrb[0].mxu0
    %v1660 = vadd.f32 0.0, %v1659
    %v1661 = vpop.f32.mrb[0].mxu0
    %v1662 = vadd.f32 0.0, %v1661
    %v1663 = vpop.f32.mrb[0].mxu0
    %v1664 = vadd.f32 0.0, %v1663
    %v1665 = vpop.f32.mrb[0].mxu0
    %v1666 = vadd.f32 0.0, %v1665
    %1667 = vdwg.mxu0
    %v1668 = vpack.c.bf16 %v1664, %v1660
    %v1669 = vpack.c.bf16 %v1666, %v1662
    %v1670 = vld [vmem:[#allocation12] sm:$0xff]
    %v1671 = vld [vmem:[#allocation12 + $0x8] sm:$0xff]
    %v1672 = vld [vmem:[#allocation12 + $0x10] sm:$0xff]
    %v1673 = vld [vmem:[#allocation12 + $0x18] sm:$0xff]
    %v1674 = vld [vmem:[#allocation12 + $0x20] sm:$0xff]
    %v1675 = vld [vmem:[#allocation12 + $0x28] sm:$0xff]
    %v1676 = vld [vmem:[#allocation12 + $0x30] sm:$0xff]
    %v1677 = vld [vmem:[#allocation12 + $0x38] sm:$0xff]
    %v1678 = vld [vmem:[#allocation12 + $0x40] sm:$0xff]
    %v1679 = vld [vmem:[#allocation12 + $0x48] sm:$0xff]
    %v1680 = vld [vmem:[#allocation12 + $0x50] sm:$0xff]
    %v1681 = vld [vmem:[#allocation12 + $0x58] sm:$0xff]
    %v1682 = vld [vmem:[#allocation12 + $0x60] sm:$0xff]
    %v1683 = vld [vmem:[#allocation12 + $0x68] sm:$0xff]
    %v1684 = vld [vmem:[#allocation12 + $0x70] sm:$0xff]
    %v1685 = vld [vmem:[#allocation12 + $0x78] sm:$0xff]
    %1686 = vset.pattern.permute.xlu0 0
    %1687 = vperm.xlu0 %1686, %v1670
    %v1688 = vpop.permute.xlu0 %1687
    %1689 = vset.pattern.permute.xlu0 0
    %1690 = vperm.xlu0 %1689, %v1671
    %v1691 = vpop.permute.xlu0 %1690
    %1692 = vset.pattern.permute.xlu0 0
    %1693 = vperm.xlu0 %1692, %v1672
    %v1694 = vpop.permute.xlu0 %1693
    %1695 = vset.pattern.permute.xlu0 0
    %1696 = vperm.xlu0 %1695, %v1673
    %v1697 = vpop.permute.xlu0 %1696
    %1698 = vset.pattern.permute.xlu0 0
    %1699 = vperm.xlu0 %1698, %v1674
    %v1700 = vpop.permute.xlu0 %1699
    %1701 = vset.pattern.permute.xlu0 0
    %1702 = vperm.xlu0 %1701, %v1675
    %v1703 = vpop.permute.xlu0 %1702
    %1704 = vset.pattern.permute.xlu0 0
    %1705 = vperm.xlu0 %1704, %v1676
    %v1706 = vpop.permute.xlu0 %1705
    %1707 = vset.pattern.permute.xlu0 0
    %1708 = vperm.xlu0 %1707, %v1677
    %v1709 = vpop.permute.xlu0 %1708
    %1710 = vset.pattern.permute.xlu0 0
    %1711 = vperm.xlu0 %1710, %v1678
    %v1712 = vpop.permute.xlu0 %1711
    %1713 = vset.pattern.permute.xlu0 0
    %1714 = vperm.xlu0 %1713, %v1679
    %v1715 = vpop.permute.xlu0 %1714
    %1716 = vset.pattern.permute.xlu0 0
    %1717 = vperm.xlu0 %1716, %v1680
    %v1718 = vpop.permute.xlu0 %1717
    %1719 = vset.pattern.permute.xlu0 0
    %1720 = vperm.xlu0 %1719, %v1681
    %v1721 = vpop.permute.xlu0 %1720
    %1722 = vset.pattern.permute.xlu0 0
    %1723 = vperm.xlu0 %1722, %v1682
    %v1724 = vpop.permute.xlu0 %1723
    %1725 = vset.pattern.permute.xlu0 0
    %1726 = vperm.xlu0 %1725, %v1683
    %v1727 = vpop.permute.xlu0 %1726
    %1728 = vset.pattern.permute.xlu0 0
    %1729 = vperm.xlu0 %1728, %v1684
    %v1730 = vpop.permute.xlu0 %1729
    %1731 = vset.pattern.permute.xlu0 0
    %1732 = vperm.xlu0 %1731, %v1685
    %v1733 = vpop.permute.xlu0 %1732
    %vm1734 = vcmp.eq.s32.totalorder %v1688, %v324
    %vm1735 = vcmp.eq.s32.totalorder %v1691, %v324
    %vm1736 = vcmp.eq.s32.totalorder %v1694, %v324
    %vm1737 = vcmp.eq.s32.totalorder %v1697, %v324
    %vm1738 = vcmp.eq.s32.totalorder %v1700, %v324
    %vm1739 = vcmp.eq.s32.totalorder %v1703, %v324
    %vm1740 = vcmp.eq.s32.totalorder %v1706, %v324
    %vm1741 = vcmp.eq.s32.totalorder %v1709, %v324
    %vm1742 = vcmp.eq.s32.totalorder %v1712, %v324
    %vm1743 = vcmp.eq.s32.totalorder %v1715, %v324
    %vm1744 = vcmp.eq.s32.totalorder %v1718, %v324
    %vm1745 = vcmp.eq.s32.totalorder %v1721, %v324
    %vm1746 = vcmp.eq.s32.totalorder %v1724, %v324
    %vm1747 = vcmp.eq.s32.totalorder %v1727, %v324
    %vm1748 = vcmp.eq.s32.totalorder %v1730, %v324
    %vm1749 = vcmp.eq.s32.totalorder %v1733, %v324
    %v1750 = vsel %vm1734, 1, 0
    %v1751 = vsel %vm1735, 1, 0
    %v1752 = vsel %vm1736, 1, 0
    %v1753 = vsel %vm1737, 1, 0
    %v1754 = vsel %vm1738, 1, 0
    %v1755 = vsel %vm1739, 1, 0
    %v1756 = vsel %vm1740, 1, 0
    %v1757 = vsel %vm1741, 1, 0
    %v1758 = vsel %vm1742, 1, 0
    %v1759 = vsel %vm1743, 1, 0
    %v1760 = vsel %vm1744, 1, 0
    %v1761 = vsel %vm1745, 1, 0
    %v1762 = vsel %vm1746, 1, 0
    %v1763 = vsel %vm1747, 1, 0
    %v1764 = vsel %vm1748, 1, 0
    %v1765 = vsel %vm1749, 1, 0
    %v1766 = vcvt.s32.f32 %v1750
    %v1767 = vcvt.s32.f32 %v1751
    %v1768 = vcvt.s32.f32 %v1752
    %v1769 = vcvt.s32.f32 %v1753
    %v1770 = vcvt.s32.f32 %v1754
    %v1771 = vcvt.s32.f32 %v1755
    %v1772 = vcvt.s32.f32 %v1756
    %v1773 = vcvt.s32.f32 %v1757
    %v1774 = vcvt.s32.f32 %v1758
    %v1775 = vcvt.s32.f32 %v1759
    %v1776 = vcvt.s32.f32 %v1760
    %v1777 = vcvt.s32.f32 %v1761
    %v1778 = vcvt.s32.f32 %v1762
    %v1779 = vcvt.s32.f32 %v1763
    %v1780 = vcvt.s32.f32 %v1764
    %v1781 = vcvt.s32.f32 %v1765
    %v1782 = vpack.c.bf16 %v1767, %v1766
    %v1783 = vpack.c.bf16 %v1769, %v1768
    %v1784 = vpack.c.bf16 %v1771, %v1770
    %v1785 = vpack.c.bf16 %v1773, %v1772
    %v1786 = vpack.c.bf16 %v1775, %v1774
    %v1787 = vpack.c.bf16 %v1777, %v1776
    %v1788 = vpack.c.bf16 %v1779, %v1778
    %v1789 = vpack.c.bf16 %v1781, %v1780
    %v1790 = vld [vmem:[#allocation14] sm:$0xff]
    %v1791 = vld [vmem:[#allocation14 + $0x8] sm:$0xff]
    %v1792 = vld [vmem:[#allocation14 + $0x10] sm:$0xff]
    %v1793 = vld [vmem:[#allocation14 + $0x18] sm:$0xff]
    %v1794 = vld [vmem:[#allocation14 + $0x20] sm:$0xff]
    %v1795 = vld [vmem:[#allocation14 + $0x28] sm:$0xff]
    %v1796 = vld [vmem:[#allocation14 + $0x30] sm:$0xff]
    %v1797 = vld [vmem:[#allocation14 + $0x38] sm:$0xff]
    %v1798 = vld [vmem:[#allocation14 + $0x40] sm:$0xff]
    %v1799 = vld [vmem:[#allocation14 + $0x48] sm:$0xff]
    %v1800 = vld [vmem:[#allocation14 + $0x50] sm:$0xff]
    %v1801 = vld [vmem:[#allocation14 + $0x58] sm:$0xff]
    %v1802 = vld [vmem:[#allocation14 + $0x60] sm:$0xff]
    %v1803 = vld [vmem:[#allocation14 + $0x68] sm:$0xff]
    %v1804 = vld [vmem:[#allocation14 + $0x70] sm:$0xff]
    %v1805 = vld [vmem:[#allocation14 + $0x78] sm:$0xff]
    %1806 = vset.pattern.permute.xlu0 0
    %1807 = vperm.xlu0 %1806, %v1790
    %v1808 = vpop.permute.xlu0 %1807
    %1809 = vset.pattern.permute.xlu0 0
    %1810 = vperm.xlu0 %1809, %v1791
    %v1811 = vpop.permute.xlu0 %1810
    %1812 = vset.pattern.permute.xlu0 0
    %1813 = vperm.xlu0 %1812, %v1792
    %v1814 = vpop.permute.xlu0 %1813
    %1815 = vset.pattern.permute.xlu0 0
    %1816 = vperm.xlu0 %1815, %v1793
    %v1817 = vpop.permute.xlu0 %1816
    %1818 = vset.pattern.permute.xlu0 0
    %1819 = vperm.xlu0 %1818, %v1794
    %v1820 = vpop.permute.xlu0 %1819
    %1821 = vset.pattern.permute.xlu0 0
    %1822 = vperm.xlu0 %1821, %v1795
    %v1823 = vpop.permute.xlu0 %1822
    %1824 = vset.pattern.permute.xlu0 0
    %1825 = vperm.xlu0 %1824, %v1796
    %v1826 = vpop.permute.xlu0 %1825
    %1827 = vset.pattern.permute.xlu0 0
    %1828 = vperm.xlu0 %1827, %v1797
    %v1829 = vpop.permute.xlu0 %1828
    %1830 = vset.pattern.permute.xlu0 0
    %1831 = vperm.xlu0 %1830, %v1798
    %v1832 = vpop.permute.xlu0 %1831
    %1833 = vset.pattern.permute.xlu0 0
    %1834 = vperm.xlu0 %1833, %v1799
    %v1835 = vpop.permute.xlu0 %1834
    %1836 = vset.pattern.permute.xlu0 0
    %1837 = vperm.xlu0 %1836, %v1800
    %v1838 = vpop.permute.xlu0 %1837
    %1839 = vset.pattern.permute.xlu0 0
    %1840 = vperm.xlu0 %1839, %v1801
    %v1841 = vpop.permute.xlu0 %1840
    %1842 = vset.pattern.permute.xlu0 0
    %1843 = vperm.xlu0 %1842, %v1802
    %v1844 = vpop.permute.xlu0 %1843
    %1845 = vset.pattern.permute.xlu0 0
    %1846 = vperm.xlu0 %1845, %v1803
    %v1847 = vpop.permute.xlu0 %1846
    %1848 = vset.pattern.permute.xlu0 0
    %1849 = vperm.xlu0 %1848, %v1804
    %v1850 = vpop.permute.xlu0 %1849
    %1851 = vset.pattern.permute.xlu0 0
    %1852 = vperm.xlu0 %1851, %v1805
    %v1853 = vpop.permute.xlu0 %1852
    %vm1854 = vcmp.eq.s32.totalorder %v1808, %v324
    %vm1855 = vcmp.eq.s32.totalorder %v1811, %v324
    %vm1856 = vcmp.eq.s32.totalorder %v1814, %v324
    %vm1857 = vcmp.eq.s32.totalorder %v1817, %v324
    %vm1858 = vcmp.eq.s32.totalorder %v1820, %v324
    %vm1859 = vcmp.eq.s32.totalorder %v1823, %v324
    %vm1860 = vcmp.eq.s32.totalorder %v1826, %v324
    %vm1861 = vcmp.eq.s32.totalorder %v1829, %v324
    %vm1862 = vcmp.eq.s32.totalorder %v1832, %v324
    %vm1863 = vcmp.eq.s32.totalorder %v1835, %v324
    %vm1864 = vcmp.eq.s32.totalorder %v1838, %v324
    %vm1865 = vcmp.eq.s32.totalorder %v1841, %v324
    %vm1866 = vcmp.eq.s32.totalorder %v1844, %v324
    %vm1867 = vcmp.eq.s32.totalorder %v1847, %v324
    %vm1868 = vcmp.eq.s32.totalorder %v1850, %v324
    %vm1869 = vcmp.eq.s32.totalorder %v1853, %v324
    %v1870 = vsel %vm1854, 1, 0
    %v1871 = vsel %vm1855, 1, 0
    %v1872 = vsel %vm1856, 1, 0
    %v1873 = vsel %vm1857, 1, 0
    %v1874 = vsel %vm1858, 1, 0
    %v1875 = vsel %vm1859, 1, 0
    %v1876 = vsel %vm1860, 1, 0
    %v1877 = vsel %vm1861, 1, 0
    %v1878 = vsel %vm1862, 1, 0
    %v1879 = vsel %vm1863, 1, 0
    %v1880 = vsel %vm1864, 1, 0
    %v1881 = vsel %vm1865, 1, 0
    %v1882 = vsel %vm1866, 1, 0
    %v1883 = vsel %vm1867, 1, 0
    %v1884 = vsel %vm1868, 1, 0
    %v1885 = vsel %vm1869, 1, 0
    %v1886 = vcvt.s32.f32 %v1870
    %v1887 = vcvt.s32.f32 %v1871
    %v1888 = vcvt.s32.f32 %v1872
    %v1889 = vcvt.s32.f32 %v1873
    %v1890 = vcvt.s32.f32 %v1874
    %v1891 = vcvt.s32.f32 %v1875
    %v1892 = vcvt.s32.f32 %v1876
    %v1893 = vcvt.s32.f32 %v1877
    %v1894 = vcvt.s32.f32 %v1878
    %v1895 = vcvt.s32.f32 %v1879
    %v1896 = vcvt.s32.f32 %v1880
    %v1897 = vcvt.s32.f32 %v1881
    %v1898 = vcvt.s32.f32 %v1882
    %v1899 = vcvt.s32.f32 %v1883
    %v1900 = vcvt.s32.f32 %v1884
    %v1901 = vcvt.s32.f32 %v1885
    %v1902 = vpack.c.bf16 %v1887, %v1886
    %v1903 = vpack.c.bf16 %v1889, %v1888
    %v1904 = vpack.c.bf16 %v1891, %v1890
    %v1905 = vpack.c.bf16 %v1893, %v1892
    %v1906 = vpack.c.bf16 %v1895, %v1894
    %v1907 = vpack.c.bf16 %v1897, %v1896
    %v1908 = vpack.c.bf16 %v1899, %v1898
    %v1909 = vpack.c.bf16 %v1901, %v1900
    %v1911 = vsel %vm570, %v1902, 0
    %v1914 = vsel %vm570, %v1903, 0
    %v1917 = vsel %vm570, %v1904, 0
    %v1920 = vsel %vm570, %v1905, 0
    %v1923 = vsel %vm570, %v1906, 0
    %v1926 = vsel %vm570, %v1907, 0
    %v1929 = vsel %vm570, %v1908, 0
    %v1932 = vsel %vm570, %v1909, 0
    %1934 = vmatprep.subr.bf16.mxu0 0
    %1935 = vmatpush1.bf16.msra.mxu0 %v1669
    %1936 = vmatprep.subr.bf16.mxu0 0
    %1937 = vmatpush1.bf16.msra.mxu0 0
    %1938 = vmatprep.subr.bf16.mxu0 0
    %1939 = vmatpush1.bf16.msra.mxu0 0
    %1940 = vmatprep.subr.bf16.mxu0 0
    %1941 = vmatpush1.bf16.msra.mxu0 0
    %1942 = vmatprep.subr.bf16.mxu0 0
    %1943 = vmatpush1.bf16.msra.mxu0 0
    %1944 = vmatprep.subr.bf16.mxu0 0
    %1945 = vmatpush1.bf16.msra.mxu0 0
    %1946 = vmatprep.subr.bf16.mxu0 0
    %1947 = vmatpush1.bf16.msra.mxu0 0
    %1948 = vmatprep.subr.bf16.mxu0 0
    %1949 = vmatpush1.bf16.msra.mxu0 0
    %1950 = vmatprep.subr.bf16.mxu0 0
    %1951 = vmatpush1.bf16.msra.mxu0 0
    %1952 = vmatprep.subr.bf16.mxu0 0
    %1953 = vmatpush1.bf16.msra.mxu0 0
    %1954 = vmatprep.subr.bf16.mxu0 0
    %1955 = vmatpush1.bf16.msra.mxu0 0
    %1956 = vmatprep.subr.bf16.mxu0 0
    %1957 = vmatpush1.bf16.msra.mxu0 0
    %1958 = vmatprep.subr.bf16.mxu0 0
    %1959 = vmatpush1.bf16.msra.mxu0 0
    %1960 = vmatprep.subr.bf16.mxu0 0
    %1961 = vmatpush1.bf16.msra.mxu0 0
    %1962 = vmatprep.subr.bf16.mxu0 0
    %1963 = vmatpush1.bf16.msra.mxu0 0
    %1964 = vmatprep.subr.bf16.mxu0 0
    %1965 = vmatpush1.bf16.msra.mxu0 0
    %1966 = vmatprep.mubr.bf16.mxu0 0
    %1967 = vmatmul.mubr.bf16.gmra.mrb[0].mxu0 %v1911
    %v1968 = vpop.f32.mrb[0].mxu0
    %v1969 = vadd.f32 0.0, %v1968
    %v1970 = vpop.f32.mrb[0].mxu0
    %v1971 = vpop.f32.mrb[0].mxu0
    %v1972 = vadd.f32 0.0, %v1971
    %v1973 = vpop.f32.mrb[0].mxu0
    %1974 = vmatprep.mubr.bf16.mxu0 0
    %1975 = vmatmul.mubr.bf16.gmra.mrb[0].mxu0 %v1914
    %v1976 = vpop.f32.mrb[0].mxu0
    %v1977 = vadd.f32 0.0, %v1976
    %v1978 = vpop.f32.mrb[0].mxu0
    %v1979 = vpop.f32.mrb[0].mxu0
    %v1980 = vadd.f32 0.0, %v1979
    %v1981 = vpop.f32.mrb[0].mxu0
    %1982 = vmatprep.mubr.bf16.mxu0 0
    %1983 = vmatmul.mubr.bf16.gmra.mrb[0].mxu0 %v1917
    %v1984 = vpop.f32.mrb[0].mxu0
    %v1985 = vadd.f32 0.0, %v1984
    %v1986 = vpop.f32.mrb[0].mxu0
    %v1987 = vpop.f32.mrb[0].mxu0
    %v1988 = vadd.f32 0.0, %v1987
    %v1989 = vpop.f32.mrb[0].mxu0
    %1990 = vmatprep.mubr.bf16.mxu0 0
    %1991 = vmatmul.mubr.bf16.gmra.mrb[0].mxu0 %v1920
    %v1992 = vpop.f32.mrb[0].mxu0
    %v1993 = vadd.f32 0.0, %v1992
    %v1994 = vpop.f32.mrb[0].mxu0
    %v1995 = vpop.f32.mrb[0].mxu0
    %v1996 = vadd.f32 0.0, %v1995
    %v1997 = vpop.f32.mrb[0].mxu0
    %1998 = vmatprep.mubr.bf16.mxu0 0
    %1999 = vmatmul.mubr.bf16.gmra.mrb[0].mxu0 %v1923
    %v2000 = vpop.f32.mrb[0].mxu0
    %v2001 = vadd.f32 0.0, %v2000
    %v2002 = vpop.f32.mrb[0].mxu0
    %v2003 = vpop.f32.mrb[0].mxu0
    %v2004 = vadd.f32 0.0, %v2003
    %v2005 = vpop.f32.mrb[0].mxu0
    %2006 = vmatprep.mubr.bf16.mxu0 0
    %2007 = vmatmul.mubr.bf16.gmra.mrb[0].mxu0 %v1926
    %v2008 = vpop.f32.mrb[0].mxu0
    %v2009 = vadd.f32 0.0, %v2008
    %v2010 = vpop.f32.mrb[0].mxu0
    %v2011 = vpop.f32.mrb[0].mxu0
    %v2012 = vadd.f32 0.0, %v2011
    %v2013 = vpop.f32.mrb[0].mxu0
    %2014 = vmatprep.mubr.bf16.mxu0 0
    %2015 = vmatmul.mubr.bf16.gmra.mrb[0].mxu0 %v1929
    %v2016 = vpop.f32.mrb[0].mxu0
    %v2017 = vadd.f32 0.0, %v2016
    %v2018 = vpop.f32.mrb[0].mxu0
    %v2019 = vpop.f32.mrb[0].mxu0
    %v2020 = vadd.f32 0.0, %v2019
    %v2021 = vpop.f32.mrb[0].mxu0
    %2022 = vmatprep.mubr.bf16.mxu0 0
    %2023 = vmatmul.mubr.bf16.gmra.mrb[0].mxu0 %v1932
    %v2024 = vpop.f32.mrb[0].mxu0
    %v2025 = vadd.f32 0.0, %v2024
    %v2026 = vpop.f32.mrb[0].mxu0
    %v2027 = vpop.f32.mrb[0].mxu0
    %v2028 = vadd.f32 0.0, %v2027
    %v2029 = vpop.f32.mrb[0].mxu0
    %2030 = vdwg.mxu0
    %v2032 = vsel %vm570, %v1782, 0
    %v2035 = vsel %vm570, %v1783, 0
    %v2038 = vsel %vm570, %v1784, 0
    %v2041 = vsel %vm570, %v1785, 0
    %v2044 = vsel %vm570, %v1786, 0
    %v2047 = vsel %vm570, %v1787, 0
    %v2050 = vsel %vm570, %v1788, 0
    %v2053 = vsel %vm570, %v1789, 0
    %2055 = vmatprep.subr.bf16.mxu0 0
    %2056 = vmatpush1.bf16.msra.mxu0 %v1668
    %2057 = vmatprep.subr.bf16.mxu0 0
    %2058 = vmatpush1.bf16.msra.mxu0 0
    %2059 = vmatprep.subr.bf16.mxu0 0
    %2060 = vmatpush1.bf16.msra.mxu0 0
    %2061 = vmatprep.subr.bf16.mxu0 0
    %2062 = vmatpush1.bf16.msra.mxu0 0
    %2063 = vmatprep.subr.bf16.mxu0 0
    %2064 = vmatpush1.bf16.msra.mxu0 0
    %2065 = vmatprep.subr.bf16.mxu0 0
    %2066 = vmatpush1.bf16.msra.mxu0 0
    %2067 = vmatprep.subr.bf16.mxu0 0
    %2068 = vmatpush1.bf16.msra.mxu0 0
    %2069 = vmatprep.subr.bf16.mxu0 0
    %2070 = vmatpush1.bf16.msra.mxu0 0
    %2071 = vmatprep.subr.bf16.mxu0 0
    %2072 = vmatpush1.bf16.msra.mxu0 0
    %2073 = vmatprep.subr.bf16.mxu0 0
    %2074 = vmatpush1.bf16.msra.mxu0 0
    %2075 = vmatprep.subr.bf16.mxu0 0
    %2076 = vmatpush1.bf16.msra.mxu0 0
    %2077 = vmatprep.subr.bf16.mxu0 0
    %2078 = vmatpush1.bf16.msra.mxu0 0
    %2079 = vmatprep.subr.bf16.mxu0 0
    %2080 = vmatpush1.bf16.msra.mxu0 0
    %2081 = vmatprep.subr.bf16.mxu0 0
    %2082 = vmatpush1.bf16.msra.mxu0 0
    %2083 = vmatprep.subr.bf16.mxu0 0
    %2084 = vmatpush1.bf16.msra.mxu0 0
    %2085 = vmatprep.subr.bf16.mxu0 0
    %2086 = vmatpush1.bf16.msra.mxu0 0
    %2087 = vmatprep.mubr.bf16.mxu0 0
    %2088 = vmatmul.mubr.bf16.gmra.mrb[0].mxu0 %v2032
    %v2089 = vpop.f32.mrb[0].mxu0
    %v2090 = vadd.f32 %v1969, %v2089
    %v2091 = vpop.f32.mrb[0].mxu0
    %v2092 = vpop.f32.mrb[0].mxu0
    %v2093 = vadd.f32 %v1972, %v2092
    %v2094 = vpop.f32.mrb[0].mxu0
    %2095 = vmatprep.mubr.bf16.mxu0 0
    %2096 = vmatmul.mubr.bf16.gmra.mrb[0].mxu0 %v2035
    %v2097 = vpop.f32.mrb[0].mxu0
    %v2098 = vadd.f32 %v1977, %v2097
    %v2099 = vpop.f32.mrb[0].mxu0
    %v2100 = vpop.f32.mrb[0].mxu0
    %v2101 = vadd.f32 %v1980, %v2100
    %v2102 = vpop.f32.mrb[0].mxu0
    %2103 = vmatprep.mubr.bf16.mxu0 0
    %2104 = vmatmul.mubr.bf16.gmra.mrb[0].mxu0 %v2038
    %v2105 = vpop.f32.mrb[0].mxu0
    %v2106 = vadd.f32 %v1985, %v2105
    %v2107 = vpop.f32.mrb[0].mxu0
    %v2108 = vpop.f32.mrb[0].mxu0
    %v2109 = vadd.f32 %v1988, %v2108
    %v2110 = vpop.f32.mrb[0].mxu0
    %2111 = vmatprep.mubr.bf16.mxu0 0
    %2112 = vmatmul.mubr.bf16.gmra.mrb[0].mxu0 %v2041
    %v2113 = vpop.f32.mrb[0].mxu0
    %v2114 = vadd.f32 %v1993, %v2113
    %v2115 = vpop.f32.mrb[0].mxu0
    %v2116 = vpop.f32.mrb[0].mxu0
    %v2117 = vadd.f32 %v1996, %v2116
    %v2118 = vpop.f32.mrb[0].mxu0
    %2119 = vmatprep.mubr.bf16.mxu0 0
    %2120 = vmatmul.mubr.bf16.gmra.mrb[0].mxu0 %v2044
    %v2121 = vpop.f32.mrb[0].mxu0
    %v2122 = vadd.f32 %v2001, %v2121
    %v2123 = vpop.f32.mrb[0].mxu0
    %v2124 = vpop.f32.mrb[0].mxu0
    %v2125 = vadd.f32 %v2004, %v2124
    %v2126 = vpop.f32.mrb[0].mxu0
    %2127 = vmatprep.mubr.bf16.mxu0 0
    %2128 = vmatmul.mubr.bf16.gmra.mrb[0].mxu0 %v2047
    %v2129 = vpop.f32.mrb[0].mxu0
    %v2130 = vadd.f32 %v2009, %v2129
    %v2131 = vpop.f32.mrb[0].mxu0
    %v2132 = vpop.f32.mrb[0].mxu0
    %v2133 = vadd.f32 %v2012, %v2132
    %v2134 = vpop.f32.mrb[0].mxu0
    %2135 = vmatprep.mubr.bf16.mxu0 0
    %2136 = vmatmul.mubr.bf16.gmra.mrb[0].mxu0 %v2050
    %v2137 = vpop.f32.mrb[0].mxu0
    %v2138 = vadd.f32 %v2017, %v2137
    %v2139 = vpop.f32.mrb[0].mxu0
    %v2140 = vpop.f32.mrb[0].mxu0
    %v2141 = vadd.f32 %v2020, %v2140
    %v2142 = vpop.f32.mrb[0].mxu0
    %2143 = vmatprep.mubr.bf16.mxu0 0
    %2144 = vmatmul.mubr.bf16.gmra.mrb[0].mxu0 %v2053
    %v2145 = vpop.f32.mrb[0].mxu0
    %v2146 = vadd.f32 %v2025, %v2145
    %v2147 = vpop.f32.mrb[0].mxu0
    %v2148 = vpop.f32.mrb[0].mxu0
    %v2149 = vadd.f32 %v2028, %v2148
    %v2150 = vpop.f32.mrb[0].mxu0
    %2151 = vdwg.mxu0
    %v2152 = vld [vmem:[#allocation15] sm:$0xff]
    %v2153 = vld [vmem:[#allocation15 + $0x8] sm:$0xff]
    %v2154 = vld [vmem:[#allocation15 + $0x10] sm:$0xff]
    %v2155 = vld [vmem:[#allocation15 + $0x18] sm:$0xff]
    %v2156 = vld [vmem:[#allocation15 + $0x20] sm:$0xff]
    %v2157 = vld [vmem:[#allocation15 + $0x28] sm:$0xff]
    %v2158 = vld [vmem:[#allocation15 + $0x30] sm:$0xff]
    %v2159 = vld [vmem:[#allocation15 + $0x38] sm:$0xff]
    %v2160 = vld [vmem:[#allocation15 + $0x40] sm:$0xff]
    %v2161 = vld [vmem:[#allocation15 + $0x48] sm:$0xff]
    %v2162 = vld [vmem:[#allocation15 + $0x50] sm:$0xff]
    %v2163 = vld [vmem:[#allocation15 + $0x58] sm:$0xff]
    %v2164 = vld [vmem:[#allocation15 + $0x60] sm:$0xff]
    %v2165 = vld [vmem:[#allocation15 + $0x68] sm:$0xff]
    %v2166 = vld [vmem:[#allocation15 + $0x70] sm:$0xff]
    %v2167 = vld [vmem:[#allocation15 + $0x78] sm:$0xff]
    %v2168 = vpack.c.bf16 %v2153, %v2152
    %v2169 = vpack.c.bf16 %v2155, %v2154
    %v2170 = vpack.c.bf16 %v2157, %v2156
    %v2171 = vpack.c.bf16 %v2159, %v2158
    %v2172 = vpack.c.bf16 %v2161, %v2160
    %v2173 = vpack.c.bf16 %v2163, %v2162
    %v2174 = vpack.c.bf16 %v2165, %v2164
    %v2175 = vpack.c.bf16 %v2167, %v2166
    %v2176 = vld [vmem:[#allocation30] sm:$0xf]
    %v2177 = vld [vmem:[#allocation30 + $0x4] sm:$0xf]
    %v2178 = vld [vmem:[#allocation30 + $0x8] sm:$0xf]
    %v2179 = vld [vmem:[#allocation30 + $0xc] sm:$0xf]
    %v2180 = vld [vmem:[#allocation30 + $0x10] sm:$0xf]
    %v2181 = vld [vmem:[#allocation30 + $0x14] sm:$0xf]
    %v2182 = vld [vmem:[#allocation30 + $0x18] sm:$0xf]
    %v2183 = vld [vmem:[#allocation30 + $0x1c] sm:$0xf]
    %v2184 = vld [vmem:[#allocation30 + $0x20] sm:$0xf]
    %v2185 = vld [vmem:[#allocation30 + $0x24] sm:$0xf]
    %v2186 = vld [vmem:[#allocation30 + $0x28] sm:$0xf]
    %v2187 = vld [vmem:[#allocation30 + $0x2c] sm:$0xf]
    %v2188 = vld [vmem:[#allocation30 + $0x30] sm:$0xf]
    %v2189 = vld [vmem:[#allocation30 + $0x34] sm:$0xf]
    %v2190 = vld [vmem:[#allocation30 + $0x38] sm:$0xf]
    %v2191 = vld [vmem:[#allocation30 + $0x3c] sm:$0xf]
    %v2208 = vunpack.c.l.b16 %v2176
    %v2209 = vunpack.c.l.b16 %v2177
    %v2210 = vunpack.c.l.b16 %v2178
    %v2211 = vunpack.c.l.b16 %v2179
    %v2212 = vunpack.c.l.b16 %v2180
    %v2213 = vunpack.c.l.b16 %v2181
    %v2214 = vunpack.c.l.b16 %v2182
    %v2215 = vunpack.c.l.b16 %v2183
    %v2216 = vunpack.c.l.b16 %v2184
    %v2217 = vunpack.c.l.b16 %v2185
    %v2218 = vunpack.c.l.b16 %v2186
    %v2219 = vunpack.c.l.b16 %v2187
    %v2220 = vunpack.c.l.b16 %v2188
    %v2221 = vunpack.c.l.b16 %v2189
    %v2222 = vunpack.c.l.b16 %v2190
    %v2223 = vunpack.c.l.b16 %v2191
    %v2224 = vpack.c.b16 %v2209, %v2208
    %v2225 = vpack.c.b16 %v2211, %v2210
    %v2226 = vpack.c.b16 %v2213, %v2212
    %v2227 = vpack.c.b16 %v2215, %v2214
    %v2228 = vpack.c.b16 %v2217, %v2216
    %v2229 = vpack.c.b16 %v2219, %v2218
    %v2230 = vpack.c.b16 %v2221, %v2220
    %v2231 = vpack.c.b16 %v2223, %v2222
    %2240 = vmatprep.subr.bf16.mxu0 0
    %2241 = vmatpush1.bf16.msra.mxu0 %v2224
    %2242 = vmatprep.subr.bf16.mxu0 0
    %2243 = vmatpush1.bf16.msra.mxu0 %v2225
    %2244 = vmatprep.subr.bf16.mxu0 0
    %2245 = vmatpush1.bf16.msra.mxu0 %v2226
    %2246 = vmatprep.subr.bf16.mxu0 0
    %2247 = vmatpush1.bf16.msra.mxu0 %v2227
    %2248 = vmatprep.subr.bf16.mxu0 0
    %2249 = vmatpush1.bf16.msra.mxu0 %v2228
    %2250 = vmatprep.subr.bf16.mxu0 0
    %2251 = vmatpush1.bf16.msra.mxu0 %v2229
    %2252 = vmatprep.subr.bf16.mxu0 0
    %2253 = vmatpush1.bf16.msra.mxu0 %v2230
    %2254 = vmatprep.subr.bf16.mxu0 0
    %2255 = vmatpush1.bf16.msra.mxu0 %v2231
    %2256 = vmatprep.subr.bf16.mxu0 0
    %2257 = vmatpush1.bf16.msra.mxu0 0
    %2258 = vmatprep.subr.bf16.mxu0 0
    %2259 = vmatpush1.bf16.msra.mxu0 0
    %2260 = vmatprep.subr.bf16.mxu0 0
    %2261 = vmatpush1.bf16.msra.mxu0 0
    %2262 = vmatprep.subr.bf16.mxu0 0
    %2263 = vmatpush1.bf16.msra.mxu0 0
    %2264 = vmatprep.subr.bf16.mxu0 0
    %2265 = vmatpush1.bf16.msra.mxu0 0
    %2266 = vmatprep.subr.bf16.mxu0 0
    %2267 = vmatpush1.bf16.msra.mxu0 0
    %2268 = vmatprep.subr.bf16.mxu0 0
    %2269 = vmatpush1.bf16.msra.mxu0 0
    %2270 = vmatprep.subr.bf16.mxu0 0
    %2271 = vmatpush1.bf16.msra.mxu0 0
    %2272 = vmatprep.mubr.bf16.mxu0 0
    %2273 = vmatmul.mubr.bf16.gmra.mrb[0].mxu0 %v2168
    %v2274 = vpop.f32.mrb[0].mxu0
    %v2275 = vadd.f32 0.0, %v2274
    %v2276 = vpop.f32.mrb[0].mxu0
    %v2277 = vpop.f32.mrb[0].mxu0
    %v2278 = vadd.f32 0.0, %v2277
    %v2279 = vpop.f32.mrb[0].mxu0
    %2280 = vmatprep.mubr.bf16.mxu0 0
    %2281 = vmatmul.mubr.bf16.gmra.mrb[0].mxu0 %v2169
    %v2282 = vpop.f32.mrb[0].mxu0
    %v2283 = vadd.f32 0.0, %v2282
    %v2284 = vpop.f32.mrb[0].mxu0
    %v2285 = vpop.f32.mrb[0].mxu0
    %v2286 = vadd.f32 0.0, %v2285
    %v2287 = vpop.f32.mrb[0].mxu0
    %2288 = vmatprep.mubr.bf16.mxu0 0
    %2289 = vmatmul.mubr.bf16.gmra.mrb[0].mxu0 %v2170
    %v2290 = vpop.f32.mrb[0].mxu0
    %v2291 = vadd.f32 0.0, %v2290
    %v2292 = vpop.f32.mrb[0].mxu0
    %v2293 = vpop.f32.mrb[0].mxu0
    %v2294 = vadd.f32 0.0, %v2293
    %v2295 = vpop.f32.mrb[0].mxu0
    %2296 = vmatprep.mubr.bf16.mxu0 0
    %2297 = vmatmul.mubr.bf16.gmra.mrb[0].mxu0 %v2171
    %v2298 = vpop.f32.mrb[0].mxu0
    %v2299 = vadd.f32 0.0, %v2298
    %v2300 = vpop.f32.mrb[0].mxu0
    %v2301 = vpop.f32.mrb[0].mxu0
    %v2302 = vadd.f32 0.0, %v2301
    %v2303 = vpop.f32.mrb[0].mxu0
    %2304 = vmatprep.mubr.bf16.mxu0 0
    %2305 = vmatmul.mubr.bf16.gmra.mrb[0].mxu0 %v2172
    %v2306 = vpop.f32.mrb[0].mxu0
    %v2307 = vadd.f32 0.0, %v2306
    %v2308 = vpop.f32.mrb[0].mxu0
    %v2309 = vpop.f32.mrb[0].mxu0
    %v2310 = vadd.f32 0.0, %v2309
    %v2311 = vpop.f32.mrb[0].mxu0
    %2312 = vmatprep.mubr.bf16.mxu0 0
    %2313 = vmatmul.mubr.bf16.gmra.mrb[0].mxu0 %v2173
    %v2314 = vpop.f32.mrb[0].mxu0
    %v2315 = vadd.f32 0.0, %v2314
    %v2316 = vpop.f32.mrb[0].mxu0
    %v2317 = vpop.f32.mrb[0].mxu0
    %v2318 = vadd.f32 0.0, %v2317
    %v2319 = vpop.f32.mrb[0].mxu0
    %2320 = vmatprep.mubr.bf16.mxu0 0
    %2321 = vmatmul.mubr.bf16.gmra.mrb[0].mxu0 %v2174
    %v2322 = vpop.f32.mrb[0].mxu0
    %v2323 = vadd.f32 0.0, %v2322
    %v2324 = vpop.f32.mrb[0].mxu0
    %v2325 = vpop.f32.mrb[0].mxu0
    %v2326 = vadd.f32 0.0, %v2325
    %v2327 = vpop.f32.mrb[0].mxu0
    %2328 = vmatprep.mubr.bf16.mxu0 0
    %2329 = vmatmul.mubr.bf16.gmra.mrb[0].mxu0 %v2175
    %v2330 = vpop.f32.mrb[0].mxu0
    %v2331 = vadd.f32 0.0, %v2330
    %v2332 = vpop.f32.mrb[0].mxu0
    %v2333 = vpop.f32.mrb[0].mxu0
    %v2334 = vadd.f32 0.0, %v2333
    %v2335 = vpop.f32.mrb[0].mxu0
    %2336 = vdwg.mxu0
    %v2337 = vadd.f32 %v2090, %v2275
    %v2338 = vadd.f32 %v2093, %v2278
    %v2339 = vadd.f32 %v2098, %v2283
    %v2340 = vadd.f32 %v2101, %v2286
    %v2341 = vadd.f32 %v2106, %v2291
    %v2342 = vadd.f32 %v2109, %v2294
    %v2343 = vadd.f32 %v2114, %v2299
    %v2344 = vadd.f32 %v2117, %v2302
    %v2345 = vadd.f32 %v2122, %v2307
    %v2346 = vadd.f32 %v2125, %v2310
    %v2347 = vadd.f32 %v2130, %v2315
    %v2348 = vadd.f32 %v2133, %v2318
    %v2349 = vadd.f32 %v2138, %v2323
    %v2350 = vadd.f32 %v2141, %v2326
    %v2351 = vadd.f32 %v2146, %v2331
    %v2352 = vadd.f32 %v2149, %v2334
    %v2353 = vld [vmem:[#allocation32] sm:$0x1]
    %v2355 = vlaneseq
    %v2356 = vshrl.u32 %v2355, 7
    %v2357 = vsub.s32 0, %v2356
    %v2358 = vrot.slane %v2353, %v2357
    %v2360 = vadd.f32 %v2337, %v2358
    %v2361 = vadd.f32 %v2338, %v2358
    %v2362 = vadd.f32 %v2339, %v2358
    %v2363 = vadd.f32 %v2340, %v2358
    %v2364 = vadd.f32 %v2341, %v2358
    %v2365 = vadd.f32 %v2342, %v2358
    %v2366 = vadd.f32 %v2343, %v2358
    %v2367 = vadd.f32 %v2344, %v2358
    %v2368 = vadd.f32 %v2345, %v2358
    %v2369 = vadd.f32 %v2346, %v2358
    %v2370 = vadd.f32 %v2347, %v2358
    %v2371 = vadd.f32 %v2348, %v2358
    %v2372 = vadd.f32 %v2349, %v2358
    %v2373 = vadd.f32 %v2350, %v2358
    %v2374 = vadd.f32 %v2351, %v2358
    %v2375 = vadd.f32 %v2352, %v2358
    %v2376 = vmax.f32 %v2360, 0.0
    %v2377 = vmax.f32 %v2361, 0.0
    %v2378 = vmax.f32 %v2362, 0.0
    %v2379 = vmax.f32 %v2363, 0.0
    %v2380 = vmax.f32 %v2364, 0.0
    %v2381 = vmax.f32 %v2365, 0.0
    %v2382 = vmax.f32 %v2366, 0.0
    %v2383 = vmax.f32 %v2367, 0.0
    %v2384 = vmax.f32 %v2368, 0.0
    %v2385 = vmax.f32 %v2369, 0.0
    %v2386 = vmax.f32 %v2370, 0.0
    %v2387 = vmax.f32 %v2371, 0.0
    %v2388 = vmax.f32 %v2372, 0.0
    %v2389 = vmax.f32 %v2373, 0.0
    %v2390 = vmax.f32 %v2374, 0.0
    %v2391 = vmax.f32 %v2375, 0.0
    %v2392 = vld [vmem:[#allocation33] sm:$0x1]
    %v2393 = vpack.c.bf16 %v2377, %v2376
    %v2394 = vpack.c.bf16 %v2379, %v2378
    %v2395 = vpack.c.bf16 %v2381, %v2380
    %v2396 = vpack.c.bf16 %v2383, %v2382
    %v2397 = vpack.c.bf16 %v2385, %v2384
    %v2398 = vpack.c.bf16 %v2387, %v2386
    %v2399 = vpack.c.bf16 %v2389, %v2388
    %v2400 = vpack.c.bf16 %v2391, %v2390
    %v2401 = vld [vmem:[#allocation2] sm:$0x1]
    %2403 = vset.pattern.permute.xlu0 0
    %2404 = vperm.xlu0 %2403, %v2401
    %v2405 = vpop.permute.xlu0 %2404
    %v2407 = vlaneseq
    %v2408 = vshrl.u32 %v2407, 7
    %v2409 = vsub.s32 0, %v2408
    %v2410 = vrot.slane %v2405, %v2409
    %2411 = vmatprep.subr.bf16.mxu0 0
    %2412 = vmatpush1.bf16.xpose.msra.mxu0 %v2393
    %2413 = vmatprep.subr.bf16.mxu0 0
    %2414 = vmatpush1.bf16.xpose.msra.mxu0 %v2394
    %2415 = vmatprep.subr.bf16.mxu0 0
    %2416 = vmatpush1.bf16.xpose.msra.mxu0 %v2395
    %2417 = vmatprep.subr.bf16.mxu0 0
    %2418 = vmatpush1.bf16.xpose.msra.mxu0 %v2396
    %2419 = vmatprep.subr.bf16.mxu0 0
    %2420 = vmatpush1.bf16.xpose.msra.mxu0 %v2397
    %2421 = vmatprep.subr.bf16.mxu0 0
    %2422 = vmatpush1.bf16.xpose.msra.mxu0 %v2398
    %2423 = vmatprep.subr.bf16.mxu0 0
    %2424 = vmatpush1.bf16.xpose.msra.mxu0 %v2399
    %2425 = vmatprep.subr.bf16.mxu0 0
    %2426 = vmatpush1.bf16.xpose.msra.mxu0 %v2400
    %2427 = vmatprep.subr.bf16.mxu0 0
    %2428 = vmatpush1.bf16.xpose.msra.mxu0 0
    %2429 = vmatprep.subr.bf16.mxu0 0
    %2430 = vmatpush1.bf16.xpose.msra.mxu0 0
    %2431 = vmatprep.subr.bf16.mxu0 0
    %2432 = vmatpush1.bf16.xpose.msra.mxu0 0
    %2433 = vmatprep.subr.bf16.mxu0 0
    %2434 = vmatpush1.bf16.xpose.msra.mxu0 0
    %2435 = vmatprep.subr.bf16.mxu0 0
    %2436 = vmatpush1.bf16.xpose.msra.mxu0 0
    %2437 = vmatprep.subr.bf16.mxu0 0
    %2438 = vmatpush1.bf16.xpose.msra.mxu0 0
    %2439 = vmatprep.subr.bf16.mxu0 0
    %2440 = vmatpush1.bf16.xpose.msra.mxu0 0
    %2441 = vmatprep.subr.bf16.mxu0 0
    %2442 = vmatpush1.bf16.xpose.msra.mxu0 0
    %2443 = vmatprep.mubr.bf16.mxu0 0
    %2444 = vmatmul.mubr.bf16.gmra.mrb[0].mxu0 %v2392
    %v2445 = vpop.f32.mrb[0].mxu0
    %v2446 = vadd.f32 %v2410, %v2445
    %v2447 = vpop.f32.mrb[0].mxu0
    %v2448 = vpop.f32.mrb[0].mxu0
    %v2449 = vpop.f32.mrb[0].mxu0
    %2450 = vdwg.mxu0
    %2451 = vst [vmem:[#allocation35] sm:$0x1] %v2446
    // Predicated region
    $region166: #{edge_prediction_gnn.1} parent=1 // pred_check
      _
    $region167: #{edge_prediction_gnn.1} parent=1 // pred_check_branch
      %2453 = sbr.rel (0) target = $region169
    $region168: #{edge_prediction_gnn.1} parent=1 // pred_region
      %s2455 = ssub.s32 16, 16
      %2456 = vsyncadd [#allocation5], %s2455
      %s2458 = sshll.u32 [#allocation35], 4
      %s2459 = int_to_ptr.vmem [resolvable:$true] %s2458
      %2461 = dma.vmem_to_hbm [thread:$0]  %s2459, 16, %s21, [#allocation5]
    $region169: #{edge_prediction_gnn.1} parent=1 // pred_fallthru
      _
    // Predicated region
    $region170: #{edge_prediction_gnn.1} parent=1 // pred_check
      _
    $region171: #{edge_prediction_gnn.1} parent=1 // pred_check_branch
      %2463 = sbr.rel (0) target = $region173
    $region172: #{edge_prediction_gnn.1} parent=1 // pred_region
      %2464 = dma.done [#allocation5], 16
    $region173: #{edge_prediction_gnn.1} parent=1 // pred_fallthru
      _
    %2465 = vsyncpa [#allocation4], 1
    %2466 = vsyncpa [#allocation7], 1
    %2467 = vsyncpa [#allocation10], 1
    %2468 = vsyncpa [#allocation13], 1
    %2469 = vsyncpa [#allocation16], 1
    %2470 = vsyncpa [#allocation19], 1
    %2471 = vsyncpa [#allocation22], 1
    %2472 = vsyncpa [#allocation25], 1
    %2473 = vsyncpa [#allocation28], 1
    %2474 = vsyncpa [#allocation31], 1
    %2475 = vsyncpa [#allocation34], 1
    %2476 = vsyncpa [#allocation5], 1

</llo_original>
